<compile_context>
chip_gen: v6e
topology: v6e:2x2x1
jax: 0.10.0
libtpu: 0.0.40
codegen_flags: <defaults>
</compile_context>

<pallas_src>
import functools
import math

import jax
import jax.numpy as jnp
from jax import lax
from jax.experimental import pallas as pl
from jax.experimental.pallas import tpu as pltpu


# ---------------------------------------------------------------------------
# Fused multi-head-attention kernel: one (batch, q-tile, head) per grid step
# ---------------------------------------------------------------------------

def _mha_kernel(xq_ref, xk_ref, xv_ref,
                wq_ref, bq_ref, wk_ref, bk_ref, wv_ref, bv_ref,
                wo_ref, bo_ref, o_ref, acc_ref, *, scale):
    h = pl.program_id(2)

    @pl.when(h == 0)
    def _():
        acc_ref[...] = jnp.zeros_like(acc_ref)

    cdt = jnp.bfloat16                     # MXU operand dtype (f32 accumulate)
    xq = xq_ref[0].astype(cdt)             # (tq, D)
    xk = xk_ref[0].astype(cdt)             # (S,  D)
    xv = xv_ref[0].astype(cdt)             # (S,  D)

    # Per-head projections; the weight refs are already the (D, Dh) head slab.
    # Fold the 1/sqrt(Dh) scale into the small (tq, Dh) q block.
    qh = (jnp.dot(xq, wq_ref[...].astype(cdt),
                  preferred_element_type=jnp.float32) + bq_ref[...]) * scale
    kh = jnp.dot(xk, wk_ref[...].astype(cdt),
                 preferred_element_type=jnp.float32) + bk_ref[...]
    vh = jnp.dot(xv, wv_ref[...].astype(cdt),
                 preferred_element_type=jnp.float32) + bv_ref[...]

    # scores = qh @ kh^T without an explicit transpose (contract Dh of both).
    s = lax.dot_general(qh.astype(cdt), kh.astype(cdt),
                        (((1,), (1,)), ((), ())),
                        preferred_element_type=jnp.float32)       # (tq, S)
    m = jnp.max(s, axis=-1, keepdims=True)
    p = jnp.exp(s - m)
    p = p * pl.reciprocal(jnp.sum(p, axis=-1, keepdims=True), approx=True)

    ah = jnp.dot(p.astype(cdt), vh.astype(cdt),
                 preferred_element_type=jnp.float32)              # (tq, Dh)

    # Head merge fused into the output projection; accumulate across heads.
    acc_ref[...] += jnp.dot(ah.astype(cdt), wo_ref[...].astype(cdt),
                            preferred_element_type=jnp.float32)   # (tq, D)

    @pl.when(h == pl.num_programs(2) - 1)
    def _():
        o_ref[0] = (acc_ref[...] + bo_ref[...]).astype(o_ref.dtype)


def multi_head_attention(query, key, value, params, *, num_heads, q_tile=256):
    """query/key/value: (B, S, D) -> (B, S, D); one fused pallas_call."""
    B, S, D = query.shape
    assert D % num_heads == 0
    Dh = D // num_heads
    # Per-head weight blocks are (D, Dh) / (Dh, D); lane dim must be 128-dense.
    assert Dh % 128 == 0 or num_heads == 1, (
        "head_dim must be a multiple of 128 for lane-dense per-head blocks")
    scale = 1.0 / math.sqrt(Dh)

    tq = min(q_tile, S)
    if S % tq != 0:
        tq = S                             # fall back to a single q tile
    assert (tq % 8 == 0) or (tq == S)
    n_q = S // tq

    bq = params["bq"].reshape(1, D)
    bk = params["bk"].reshape(1, D)
    bv = params["bv"].reshape(1, D)
    bo = params["bo"].reshape(1, D)

    xq_spec = pl.BlockSpec((1, tq, D), lambda b, q, h: (b, q, 0))
    xkv_spec = pl.BlockSpec((1, S, D), lambda b, q, h: (b, 0, 0))
    w_head_spec = pl.BlockSpec((D, Dh), lambda b, q, h: (0, h))   # Wq/Wk/Wv slab
    b_head_spec = pl.BlockSpec((1, Dh), lambda b, q, h: (0, h))
    wo_spec = pl.BlockSpec((Dh, D), lambda b, q, h: (h, 0))       # Wo slab
    bo_spec = pl.BlockSpec((1, D), lambda b, q, h: (0, 0))
    out_spec = pl.BlockSpec((1, tq, D), lambda b, q, h: (b, q, 0))

    flops = 8 * B * S * D * D + 4 * B * S * S * D
    bytes_accessed = 4 * (4 * B * S * D + 4 * D * D + 4 * D)
    cost = pl.CostEstimate(flops=flops,
                           transcendentals=B * num_heads * S * S,
                           bytes_accessed=bytes_accessed)

    return pl.pallas_call(
        functools.partial(_mha_kernel, scale=scale),
        out_shape=jax.ShapeDtypeStruct((B, S, D), query.dtype),
        grid=(B, n_q, num_heads),
        in_specs=[xq_spec, xkv_spec, xkv_spec,
                  w_head_spec, b_head_spec,
                  w_head_spec, b_head_spec,
                  w_head_spec, b_head_spec,
                  wo_spec, bo_spec],
        out_specs=out_spec,
        scratch_shapes=[pltpu.VMEM((tq, D), jnp.float32)],
        compiler_params=pltpu.CompilerParams(
            dimension_semantics=("parallel", "parallel", "arbitrary")),
        cost_estimate=cost,
    )(query, key, value,
      params["wq"], bq, params["wk"], bk, params["wv"], bv,
      params["wo"], bo)


# ---------------------------------------------------------------------------
# Parameters + pure-JAX reference (for correctness check)
# ---------------------------------------------------------------------------

def init_mha_params(key, model_dim):
    def lin(k, fan_in, fan_out):
        kw, kb = jax.random.split(k)
        bound = 1.0 / math.sqrt(fan_in)
        w = jax.random.uniform(kw, (fan_in, fan_out), jnp.float32, -bound, bound)
        b = jax.random.uniform(kb, (fan_out,), jnp.float32, -bound, bound)
        return w, b

    ks = jax.random.split(key, 4)
    p = {}
    p["wq"], p["bq"] = lin(ks[0], model_dim, model_dim)
    p["wk"], p["bk"] = lin(ks[1], model_dim, model_dim)
    p["wv"], p["bv"] = lin(ks[2], model_dim, model_dim)
    p["wo"], p["bo"] = lin(ks[3], model_dim, model_dim)
    return p


def mha_reference(query, key, value, params, num_heads):
    """Pure-JAX replica of the PyTorch module forward (mask=None)."""
    B, S, D = query.shape
    Dh = D // num_heads

    def heads(x, w, b):
        return (x @ w + b).reshape(B, S, num_heads, Dh).transpose(0, 2, 1, 3)

    q = heads(query, params["wq"], params["bq"])
    k = heads(key, params["wk"], params["bk"])
    v = heads(value, params["wv"], params["bv"])
    s = jnp.einsum("bhqd,bhkd->bhqk", q, k) / jnp.sqrt(jnp.float32(Dh))
    p = jax.nn.softmax(s, axis=-1)
    a = jnp.einsum("bhqk,bhkd->bhqd", p, v).transpose(0, 2, 1, 3).reshape(B, S, D)
    return a @ params["wo"] + params["bo"]


# ---------------------------------------------------------------------------
# main
# ---------------------------------------------------------------------------

if __name__ == "__main__":
    model_dim = 256      # head_dim = 128 -> lane-dense per-head blocks
    num_heads = 2
    batch = 2
    seq = 128

    key = jax.random.PRNGKey(0)
    ks = jax.random.split(key, 4)
    query = jax.random.normal(ks[0], (batch, seq, model_dim), dtype=jnp.float32)
    key_in = jax.random.normal(ks[1], (batch, seq, model_dim), dtype=jnp.float32)
    value = jax.random.normal(ks[2], (batch, seq, model_dim), dtype=jnp.float32)
    params = init_mha_params(ks[3], model_dim)

    fwd = jax.jit(functools.partial(multi_head_attention, num_heads=num_heads))
    out = fwd(query, key_in, value, params)
    jax.block_until_ready(out)

    ref = mha_reference(query, key_in, value, params, num_heads)

    assert out.shape == (batch, seq, model_dim)
    assert jnp.all(jnp.isfinite(out))
    max_err = float(jnp.max(jnp.abs(out - ref)))
    assert max_err < 2e-2, f"max abs error vs reference: {max_err}"
    print("KERNEL_OK")
</pallas_src>

<mosaic_0001>
module attributes {stable_mosaic.version = 11 : i64} {
  func.func @_mha_kernel(%arg0: i32, %arg1: i32, %arg2: i32, %arg3: memref<1x128x256xf32, #tpu.memory_space<vmem>>, %arg4: memref<1x128x256xf32, #tpu.memory_space<vmem>>, %arg5: memref<1x128x256xf32, #tpu.memory_space<vmem>>, %arg6: memref<256x128xf32, #tpu.memory_space<vmem>>, %arg7: memref<1x128xf32, #tpu.memory_space<vmem>>, %arg8: memref<256x128xf32, #tpu.memory_space<vmem>>, %arg9: memref<1x128xf32, #tpu.memory_space<vmem>>, %arg10: memref<256x128xf32, #tpu.memory_space<vmem>>, %arg11: memref<1x128xf32, #tpu.memory_space<vmem>>, %arg12: memref<128x256xf32, #tpu.memory_space<vmem>>, %arg13: memref<1x256xf32, #tpu.memory_space<vmem>>, %arg14: memref<1x128x256xf32, #tpu.memory_space<vmem>>, %arg15: memref<128x256xf32, #tpu.memory_space<vmem>>) attributes {dimension_semantics = [#tpu.dimension_semantics<parallel>, #tpu.dimension_semantics<parallel>, #tpu.dimension_semantics<arbitrary>], iteration_bounds = array<i64: 2, 1, 2>, scalar_prefetch = 0 : i64, scratch_operands = 1 : i64, tpu.core_type = #tpu.core_type<tc>, window_params = [{transform_indices = @transform_0, window_bounds = array<i64: 1, 128, 256>}, {transform_indices = @transform_1, window_bounds = array<i64: 1, 128, 256>}, {transform_indices = @transform_2, window_bounds = array<i64: 1, 128, 256>}, {transform_indices = @transform_3, window_bounds = array<i64: 256, 128>}, {transform_indices = @transform_4, window_bounds = array<i64: 1, 128>}, {transform_indices = @transform_5, window_bounds = array<i64: 256, 128>}, {transform_indices = @transform_6, window_bounds = array<i64: 1, 128>}, {transform_indices = @transform_7, window_bounds = array<i64: 256, 128>}, {transform_indices = @transform_8, window_bounds = array<i64: 1, 128>}, {transform_indices = @transform_9, window_bounds = array<i64: 128, 256>}, {pipeline_mode = #tpu.pipeline_mode<synchronous>, transform_indices = @transform_10, window_bounds = array<i64: 1, 256>}, {transform_indices = @transform_11, window_bounds = array<i64: 1, 128, 256>}]} {
    %c0_i32 = arith.constant 0 : i32
    %0 = arith.cmpi eq, %arg2, %c0_i32 : i32
    %1 = arith.extui %0 : i1 to i32
    %c0_i32_0 = arith.constant 0 : i32
    %2 = arith.cmpi ne, %1, %c0_i32_0 : i32
    scf.if %2 {
      %cst_36 = arith.constant 0.000000e+00 : f32
      %58 = vector.broadcast %cst_36 : f32 to vector<128x256xf32>
      %c0_37 = arith.constant 0 : index
      %c0_38 = arith.constant 0 : index
      %59 = vector.load %arg15[%c0_37, %c0_38] : memref<128x256xf32, #tpu.memory_space<vmem>>, vector<128x256xf32>
      tpu.vector_store %arg15[%c0_37, %c0_38], %58 {strides = array<i32>} : memref<128x256xf32, #tpu.memory_space<vmem>>, vector<128x256xf32>,
    } else {
    }
    %c0 = arith.constant 0 : index
    %c0_1 = arith.constant 0 : index
    %c0_2 = arith.constant 0 : index
    %3 = vector.load %arg3[%c0, %c0_1, %c0_2] : memref<1x128x256xf32, #tpu.memory_space<vmem>>, vector<1x128x256xf32>
    %4 = vector.shape_cast %3 : vector<1x128x256xf32> to vector<128x256xf32>
    %5 = arith.truncf %4 : vector<128x256xf32> to vector<128x256xbf16>
    %c0_3 = arith.constant 0 : index
    %c0_4 = arith.constant 0 : index
    %c0_5 = arith.constant 0 : index
    %6 = vector.load %arg4[%c0_3, %c0_4, %c0_5] : memref<1x128x256xf32, #tpu.memory_space<vmem>>, vector<1x128x256xf32>
    %7 = vector.shape_cast %6 : vector<1x128x256xf32> to vector<128x256xf32>
    %8 = arith.truncf %7 : vector<128x256xf32> to vector<128x256xbf16>
    %c0_6 = arith.constant 0 : index
    %c0_7 = arith.constant 0 : index
    %c0_8 = arith.constant 0 : index
    %9 = vector.load %arg5[%c0_6, %c0_7, %c0_8] : memref<1x128x256xf32, #tpu.memory_space<vmem>>, vector<1x128x256xf32>
    %10 = vector.shape_cast %9 : vector<1x128x256xf32> to vector<128x256xf32>
    %11 = arith.truncf %10 : vector<128x256xf32> to vector<128x256xbf16>
    %c0_9 = arith.constant 0 : index
    %c0_10 = arith.constant 0 : index
    %12 = vector.load %arg6[%c0_9, %c0_10] : memref<256x128xf32, #tpu.memory_space<vmem>>, vector<256x128xf32>
    %13 = arith.truncf %12 : vector<256x128xf32> to vector<256x128xbf16>
    %cst = arith.constant dense<0.000000e+00> : vector<128x128xf32>
    %14 = tpu.matmul %5, %13, %cst {dimension_numbers = #tpu.dot_dimension_numbers<[1], [0], [0], [1], [0, 0, 1, 1], [], []>} : vector<128x256xbf16>, vector<256x128xbf16>, vector<128x128xf32> -> vector<128x128xf32>
    %c0_11 = arith.constant 0 : index
    %c0_12 = arith.constant 0 : index
    %15 = vector.load %arg7[%c0_11, %c0_12] : memref<1x128xf32, #tpu.memory_space<vmem>>, vector<1x128xf32>
    %16 = vector.broadcast %15 : vector<1x128xf32> to vector<128x128xf32>
    %17 = arith.addf %14, %16 : vector<128x128xf32>
    %cst_13 = arith.constant 0.0883883461 : f32
    %18 = vector.broadcast %cst_13 : f32 to vector<128x128xf32>
    %19 = arith.mulf %17, %18 : vector<128x128xf32>
    %c0_14 = arith.constant 0 : index
    %c0_15 = arith.constant 0 : index
    %20 = vector.load %arg8[%c0_14, %c0_15] : memref<256x128xf32, #tpu.memory_space<vmem>>, vector<256x128xf32>
    %21 = arith.truncf %20 : vector<256x128xf32> to vector<256x128xbf16>
    %cst_16 = arith.constant dense<0.000000e+00> : vector<128x128xf32>
    %22 = tpu.matmul %8, %21, %cst_16 {dimension_numbers = #tpu.dot_dimension_numbers<[1], [0], [0], [1], [0, 0, 1, 1], [], []>} : vector<128x256xbf16>, vector<256x128xbf16>, vector<128x128xf32> -> vector<128x128xf32>
    %c0_17 = arith.constant 0 : index
    %c0_18 = arith.constant 0 : index
    %23 = vector.load %arg9[%c0_17, %c0_18] : memref<1x128xf32, #tpu.memory_space<vmem>>, vector<1x128xf32>
    %24 = vector.broadcast %23 : vector<1x128xf32> to vector<128x128xf32>
    %25 = arith.addf %22, %24 : vector<128x128xf32>
    %c0_19 = arith.constant 0 : index
    %c0_20 = arith.constant 0 : index
    %26 = vector.load %arg10[%c0_19, %c0_20] : memref<256x128xf32, #tpu.memory_space<vmem>>, vector<256x128xf32>
    %27 = arith.truncf %26 : vector<256x128xf32> to vector<256x128xbf16>
    %cst_21 = arith.constant dense<0.000000e+00> : vector<128x128xf32>
    %28 = tpu.matmul %11, %27, %cst_21 {dimension_numbers = #tpu.dot_dimension_numbers<[1], [0], [0], [1], [0, 0, 1, 1], [], []>} : vector<128x256xbf16>, vector<256x128xbf16>, vector<128x128xf32> -> vector<128x128xf32>
    %c0_22 = arith.constant 0 : index
    %c0_23 = arith.constant 0 : index
    %29 = vector.load %arg11[%c0_22, %c0_23] : memref<1x128xf32, #tpu.memory_space<vmem>>, vector<1x128xf32>
    %30 = vector.broadcast %29 : vector<1x128xf32> to vector<128x128xf32>
    %31 = arith.addf %28, %30 : vector<128x128xf32>
    %32 = arith.truncf %19 : vector<128x128xf32> to vector<128x128xbf16>
    %33 = arith.truncf %25 : vector<128x128xf32> to vector<128x128xbf16>
    %cst_24 = arith.constant dense<0.000000e+00> : vector<128x128xf32>
    %34 = tpu.matmul %32, %33, %cst_24 {dimension_numbers = #tpu.dot_dimension_numbers<[1], [1], [0], [0], [0, 0, 1, 0], [], []>} : vector<128x128xbf16>, vector<128x128xbf16>, vector<128x128xf32> -> vector<128x128xf32>
    %cst_25 = arith.constant dense<0xFF800000> : vector<128xf32>
    %35 = vector.multi_reduction <maximumf>, %34, %cst_25 [1] : vector<128x128xf32> to vector<128xf32>
    %36 = vector.shape_cast %35 : vector<128xf32> to vector<128x1xf32>
    %37 = vector.broadcast %36 : vector<128x1xf32> to vector<128x128xf32>
    %38 = arith.subf %34, %37 : vector<128x128xf32>
    %39 = math.exp %38 : vector<128x128xf32>
    %cst_26 = arith.constant dense<0.000000e+00> : vector<128xf32>
    %40 = vector.multi_reduction <add>, %39, %cst_26 [1] : vector<128x128xf32> to vector<128xf32>
    %41 = vector.shape_cast %40 : vector<128xf32> to vector<128x1xf32>
    %42 = tpu.reciprocal %41 {approx = true} : vector<128x1xf32> -> vector<128x1xf32>
    %43 = vector.broadcast %42 : vector<128x1xf32> to vector<128x128xf32>
    %44 = arith.mulf %39, %43 : vector<128x128xf32>
    %45 = arith.truncf %44 : vector<128x128xf32> to vector<128x128xbf16>
    %46 = arith.truncf %31 : vector<128x128xf32> to vector<128x128xbf16>
    %cst_27 = arith.constant dense<0.000000e+00> : vector<128x128xf32>
    %47 = tpu.matmul %45, %46, %cst_27 {dimension_numbers = #tpu.dot_dimension_numbers<[1], [0], [0], [1], [0, 0, 1, 1], [], []>} : vector<128x128xbf16>, vector<128x128xbf16>, vector<128x128xf32> -> vector<128x128xf32>
    %c0_28 = arith.constant 0 : index
    %c0_29 = arith.constant 0 : index
    %48 = vector.load %arg15[%c0_28, %c0_29] : memref<128x256xf32, #tpu.memory_space<vmem>>, vector<128x256xf32>
    %49 = arith.truncf %47 : vector<128x128xf32> to vector<128x128xbf16>
    %c0_30 = arith.constant 0 : index
    %c0_31 = arith.constant 0 : index
    %50 = vector.load %arg12[%c0_30, %c0_31] : memref<128x256xf32, #tpu.memory_space<vmem>>, vector<128x256xf32>
    %51 = arith.truncf %50 : vector<128x256xf32> to vector<128x256xbf16>
    %cst_32 = arith.constant dense<0.000000e+00> : vector<128x256xf32>
    %52 = tpu.matmul %49, %51, %cst_32 {dimension_numbers = #tpu.dot_dimension_numbers<[1], [0], [0], [1], [0, 0, 1, 1], [], []>} : vector<128x128xbf16>, vector<128x256xbf16>, vector<128x256xf32> -> vector<128x256xf32>
    %53 = arith.addf %48, %52 : vector<128x256xf32>
    %c0_33 = arith.constant 0 : index
    %c0_34 = arith.constant 0 : index
    %54 = vector.load %arg15[%c0_33, %c0_34] : memref<128x256xf32, #tpu.memory_space<vmem>>, vector<128x256xf32>
    tpu.vector_store %arg15[%c0_33, %c0_34], %53 {strides = array<i32>} : memref<128x256xf32, #tpu.memory_space<vmem>>, vector<128x256xf32>,
    %c1_i32 = arith.constant 1 : i32
    %55 = arith.cmpi eq, %arg2, %c1_i32 : i32
    %56 = arith.extui %55 : i1 to i32
    %c0_i32_35 = arith.constant 0 : i32
    %57 = arith.cmpi ne, %56, %c0_i32_35 : i32
    scf.if %57 {
      %c0_36 = arith.constant 0 : index
      %c0_37 = arith.constant 0 : index
      %58 = vector.load %arg15[%c0_36, %c0_37] : memref<128x256xf32, #tpu.memory_space<vmem>>, vector<128x256xf32>
      %c0_38 = arith.constant 0 : index
      %c0_39 = arith.constant 0 : index
      %59 = vector.load %arg13[%c0_38, %c0_39] : memref<1x256xf32, #tpu.memory_space<vmem>>, vector<1x256xf32>
      %60 = vector.broadcast %59 : vector<1x256xf32> to vector<128x256xf32>
      %61 = arith.addf %58, %60 : vector<128x256xf32>
      %c0_40 = arith.constant 0 : index
      %c0_41 = arith.constant 0 : index
      %c0_42 = arith.constant 0 : index
      %62 = vector.load %arg14[%c0_40, %c0_41, %c0_42] : memref<1x128x256xf32, #tpu.memory_space<vmem>>, vector<1x128x256xf32>
      %63 = vector.shape_cast %62 : vector<1x128x256xf32> to vector<128x256xf32>
      %64 = vector.shape_cast %61 : vector<128x256xf32> to vector<1x128x256xf32>
      tpu.vector_store %arg14[%c0_40, %c0_41, %c0_42], %64 {strides = array<i32>} : memref<1x128x256xf32, #tpu.memory_space<vmem>>, vector<1x128x256xf32>,
    } else {
    }
    return
  }
  func.func @transform_0(%arg0: i32, %arg1: i32, %arg2: i32) -> (i32, i32, i32) {
    %c0_i32 = arith.constant 0 : i32
    %c0_i32_0 = arith.constant 0 : i32
    return %arg0, %arg1, %c0_i32 : i32, i32, i32
  }
  func.func @transform_1(%arg0: i32, %arg1: i32, %arg2: i32) -> (i32, i32, i32) {
    %c0_i32 = arith.constant 0 : i32
    %c0_i32_0 = arith.constant 0 : i32
    %c0_i32_1 = arith.constant 0 : i32
    return %arg0, %c0_i32, %c0_i32_0 : i32, i32, i32
  }
  func.func @transform_2(%arg0: i32, %arg1: i32, %arg2: i32) -> (i32, i32, i32) {
    %c0_i32 = arith.constant 0 : i32
    %c0_i32_0 = arith.constant 0 : i32
    %c0_i32_1 = arith.constant 0 : i32
    return %arg0, %c0_i32, %c0_i32_0 : i32, i32, i32
  }
  func.func @transform_3(%arg0: i32, %arg1: i32, %arg2: i32) -> (i32, i32) {
    %c0_i32 = arith.constant 0 : i32
    %c0_i32_0 = arith.constant 0 : i32
    return %c0_i32, %arg2 : i32, i32
  }
  func.func @transform_4(%arg0: i32, %arg1: i32, %arg2: i32) -> (i32, i32) {
    %c0_i32 = arith.constant 0 : i32
    %c0_i32_0 = arith.constant 0 : i32
    return %c0_i32, %arg2 : i32, i32
  }
  func.func @transform_5(%arg0: i32, %arg1: i32, %arg2: i32) -> (i32, i32) {
    %c0_i32 = arith.constant 0 : i32
    %c0_i32_0 = arith.constant 0 : i32
    return %c0_i32, %arg2 : i32, i32
  }
  func.func @transform_6(%arg0: i32, %arg1: i32, %arg2: i32) -> (i32, i32) {
    %c0_i32 = arith.constant 0 : i32
    %c0_i32_0 = arith.constant 0 : i32
    return %c0_i32, %arg2 : i32, i32
  }
  func.func @transform_7(%arg0: i32, %arg1: i32, %arg2: i32) -> (i32, i32) {
    %c0_i32 = arith.constant 0 : i32
    %c0_i32_0 = arith.constant 0 : i32
    return %c0_i32, %arg2 : i32, i32
  }
  func.func @transform_8(%arg0: i32, %arg1: i32, %arg2: i32) -> (i32, i32) {
    %c0_i32 = arith.constant 0 : i32
    %c0_i32_0 = arith.constant 0 : i32
    return %c0_i32, %arg2 : i32, i32
  }
  func.func @transform_9(%arg0: i32, %arg1: i32, %arg2: i32) -> (i32, i32) {
    %c0_i32 = arith.constant 0 : i32
    %c0_i32_0 = arith.constant 0 : i32
    return %arg2, %c0_i32 : i32, i32
  }
  func.func @transform_10(%arg0: i32, %arg1: i32, %arg2: i32) -> (i32, i32) {
    %c0_i32 = arith.constant 0 : i32
    %c0_i32_0 = arith.constant 0 : i32
    %c0_i32_1 = arith.constant 0 : i32
    return %c0_i32, %c0_i32_0 : i32, i32
  }
  func.func @transform_11(%arg0: i32, %arg1: i32, %arg2: i32) -> (i32, i32, i32) {
    %c0_i32 = arith.constant 0 : i32
    %c0_i32_0 = arith.constant 0 : i32
    return %arg0, %arg1, %c0_i32 : i32, i32, i32
  }
}

</mosaic_0001>

<llo_original>
// kernel: multi_head_attention.1
$region0: #{multi_head_attention.1}
  #allocation0 [shape = 'u32[]', space=smem, size = 0x4, offset = 0x4, fixed_abs, tag = 'smem constant byte address 0x4 - core index']
  #allocation1 [shape = 'u32[144,128]{1,0:T(1,128)}', space=vmem, size = 0x12000, scoped, tag = 'internal scratch']
  #allocation2 [shape = 'f32[128,256]{1,0:T(8,128)}', space=vmem, size = 0x20000, scoped, tag = 'scratch operand']
  %s0 = inlined_call_operand.hbm [shape: f32[2,128,256], index: 0, kind: input, shape index: {}]
  %s1 = inlined_call_operand.hbm [shape: f32[2,128,256], index: 1, kind: input, shape index: {}]
  %s2 = inlined_call_operand.hbm [shape: f32[2,128,256], index: 2, kind: input, shape index: {}]
  %s3 = inlined_call_operand.hbm [shape: f32[256,256], index: 3, kind: input, shape index: {}]
  %s4 = inlined_call_operand.vmem [shape: f32[1,256], index: 4, kind: input, shape index: {}]
  %s5 = inlined_call_operand.hbm [shape: f32[256,256], index: 5, kind: input, shape index: {}]
  %s6 = inlined_call_operand.vmem [shape: f32[1,256], index: 6, kind: input, shape index: {}]
  %s7 = inlined_call_operand.hbm [shape: f32[256,256], index: 7, kind: input, shape index: {}]
  %s8 = inlined_call_operand.vmem [shape: f32[1,256], index: 8, kind: input, shape index: {}]
  %s9 = inlined_call_operand.hbm [shape: f32[256,256], index: 9, kind: input, shape index: {}]
  %s10 = inlined_call_operand.vmem [shape: f32[1,256], index: 10, kind: input, shape index: {}]
  %s11 = inlined_call_operand.hbm [shape: f32[2,128,256], index: 11, kind: output, shape index: {}]
  %s12 = sld [smem:[#allocation0]]
  $region113: #{multi_head_attention.1} parent=0
    _
  %s14 = ssub.s32 1, %s12
  %s15 = scalar_select 0, %s14, %s12
  $region1: #{multi_head_attention.1} parent=0
    #allocation3 [shape = 'u8[262144]{0}', space=vmem, size = 0x40000, scoped, tag = 'input window, operand 0']
    #allocation4 [shape = 's32[2]{0}', space=sflag, size = 0x8, scoped, tag = 'scoped memory for multi_head_attention.1']
    #allocation5 [shape = 's32[2]{0}', space=sflag, size = 0x8, scoped, tag = 'scoped memory for multi_head_attention.1']
    #allocation6 [shape = 'u8[262144]{0}', space=vmem, size = 0x40000, scoped, tag = 'input window, operand 1']
    #allocation7 [shape = 's32[2]{0}', space=sflag, size = 0x8, scoped, tag = 'scoped memory for multi_head_attention.1']
    #allocation8 [shape = 'u8[262144]{0}', space=vmem, size = 0x40000, scoped, tag = 'input window, operand 2']
    #allocation9 [shape = 'u8[262144]{0}', space=vmem, size = 0x40000, scoped, tag = 'input window, operand 3']
    #allocation10 [shape = 's32[2]{0}', space=sflag, size = 0x8, scoped, tag = 'scoped memory for multi_head_attention.1']
    #allocation11 [shape = 'u8[262144]{0}', space=vmem, size = 0x40000, scoped, tag = 'input window, operand 5']
    #allocation12 [shape = 'u8[262144]{0}', space=vmem, size = 0x40000, scoped, tag = 'input window, operand 7']
    #allocation13 [shape = 's32[2]{0}', space=sflag, size = 0x8, scoped, tag = 'scoped memory for multi_head_attention.1']
    #allocation14 [shape = 'u8[262144]{0}', space=vmem, size = 0x40000, scoped, tag = 'input window, operand 9']
    #allocation15 [shape = 'u8[262144]{0}', space=vmem, size = 0x40000, scoped, tag = 'output window, operand 0']
    %16 = vsyncpa [#allocation4], 0
    %s17 = scalar_lea.sflag [#allocation4], 1
    %18 = vsyncpa %s17, 0
    %19 = vsyncpa [#allocation7], 0
    %s20 = scalar_lea.sflag [#allocation7], 1
    %21 = vsyncpa %s20, 0
    %22 = vsyncpa [#allocation10], 0
    %s23 = scalar_lea.sflag [#allocation10], 1
    %24 = vsyncpa %s23, 0
    %25 = vsyncpa [#allocation13], 0
    %s26 = scalar_lea.sflag [#allocation13], 1
    %27 = vsyncpa %s26, 0
    %28 = vsyncpa [#allocation5], 0
    %s29 = scalar_lea.sflag [#allocation5], 1
    %30 = vsyncpa %s29, 0
    loop: start=0, step=1, limit=6
    $region2: #{multi_head_attention.1} parent=1 // loop_pre_header
      _
    $region3: #{multi_head_attention.1} parent=1 // loop_header
      %s32 = sphi 0, %s36
      %p33 = scmp.ge.s32.totalorder %s32, 6
      %s39 = sphi 0, %s58
      %s40 = sphi 0, %s54
      %s41 = sphi 0, %s50
      %s42 = sphi 0, %s39
      %s43 = sphi 0, %s40
      %s44 = sphi 0, %s41
      %s45 = sphi 0, %s42
      %s46 = sphi 0, %s43
      %s47 = sphi 0, %s44
      %s63 = sphi 0, %s65
      %s66 = sphi 0, %s63
      %s67 = sphi 0, %s66
      %s83 = sphi 0, %s67
      %s89 = sphi 0, %s91
      %s92 = sphi 0, %s89
      %s93 = sphi 0, %s92
      %s109 = sphi 0, %s93
      %s115 = sphi 0, %s117
      %s118 = sphi 0, %s115
      %s119 = sphi 0, %s118
      %s135 = sphi 0, %s119
      %s141 = sphi 0, %s143
      %s144 = sphi 0, %s141
      %s145 = sphi 0, %s144
      %s161 = sphi 0, %s145
      %s167 = sphi 0, %s169
      %s170 = sphi 0, %s167
      %s171 = sphi 0, %s170
      %s187 = sphi 0, %s171
      %s193 = sphi 0, %s195
      %s196 = sphi 0, %s193
      %s197 = sphi 0, %s196
      %s213 = sphi 0, %s197
      %s219 = sphi 0, %s221
      %s222 = sphi 0, %s219
      %s223 = sphi 0, %s222
      %s239 = sphi 0, %s223
      %s245 = sphi 0, %s247
      %s248 = sphi 0, %s245
      %s249 = sphi 0, %s248
      %s265 = sphi 0, %s249
      %s271 = sphi 0, %s273
      %s274 = sphi 0, %s271
      %s275 = sphi 0, %s274
      %s291 = sphi 0, %s275
      %s297 = sphi 0, %s299
      %s300 = sphi 0, %s297
      %s301 = sphi 0, %s300
      %s317 = sphi 0, %s301
      %s321 = sphi 0, %s321
      %s323 = sphi 0, %s321
      %s324 = sphi 0, %s323
      %s338 = sphi 0, %s324
      %s346 = sphi 0, %s348
      %s349 = sphi 0, %s346
      %s350 = sphi 0, %s349
      %s366 = sphi 0, %s350
    $region4: #{multi_head_attention.1} parent=1 // loop_header_branch
      %35 = sbr.rel (%p33) target = $region8
    $region5: #{multi_head_attention.1} parent=1 // loop_body
      %s37 = ssub.s32 %s32, 1
      %s38 = ssub.s32 %s32, 2
      %s48 = sadd.s32 1, %s41
      %p49 = scmp.ge.s32.totalorder %s48, 2
      %s50 = scalar_select %p49, 0, %s48
      %s51 = sadd.s32 1, %s40
      %s52 = scalar_select %p49, %s51, %s40
      %p53 = scmp.ge.s32.totalorder %s52, 1
      %s54 = scalar_select %p53, 0, %s52
      %s55 = sadd.s32 1, %s39
      %s56 = scalar_select %p53, %s55, %s39
      %p57 = scmp.ge.s32.totalorder %s56, 2
      %s58 = scalar_select %p57, 0, %s56
      %s59 = ssub.s32 %s39, %s58
      %s60 = ssub.s32 %s40, %s54
      %s61 = sor.u32 %s59, %s60
      %p62 = scmp.eq.s32.totalorder %s61, 0
      %s64 = sadd.s32 %s63, 1
      %s65 = scalar_select %p62, %s63, %s64
      %p68 = pneg %p62
      %p69 = scmp.eq.s32.totalorder %s32, 3
      %p70 = por %p68, %p69
      %p71 = scmp.ne.s32.totalorder %s63, %s66
      %p72 = scmp.eq.s32.totalorder %s32, 0
      %p73 = por %p71, %p72
      %p74 = scmp.ne.s32.totalorder %s63, %s66
      %p75 = scmp.eq.s32.totalorder %s37, 3
      %p76 = por %p74, %p75
      %p77 = scmp.ne.s32.totalorder %s66, %s67
      %p78 = scmp.eq.s32.totalorder %s37, 0
      %p79 = por %p77, %p78
      %p80 = scmp.ne.s32.totalorder %s66, %s67
      %p81 = scmp.eq.s32.totalorder %s38, 3
      %p82 = por %p80, %p81
      %p84 = scmp.ne.s32.totalorder %s67, %s83
      %p85 = scmp.eq.s32.totalorder %s38, 0
      %p86 = por %p84, %p85
      %s87 = ssub.s32 %s39, %s58
      %p88 = scmp.eq.s32.totalorder %s87, 0
      %s90 = sadd.s32 %s89, 1
      %s91 = scalar_select %p88, %s89, %s90
      %p94 = pneg %p88
      %p95 = scmp.eq.s32.totalorder %s32, 3
      %p96 = por %p94, %p95
      %p97 = scmp.ne.s32.totalorder %s89, %s92
      %p98 = scmp.eq.s32.totalorder %s32, 0
      %p99 = por %p97, %p98
      %p100 = scmp.ne.s32.totalorder %s89, %s92
      %p101 = scmp.eq.s32.totalorder %s37, 3
      %p102 = por %p100, %p101
      %p103 = scmp.ne.s32.totalorder %s92, %s93
      %p104 = scmp.eq.s32.totalorder %s37, 0
      %p105 = por %p103, %p104
      %p106 = scmp.ne.s32.totalorder %s92, %s93
      %p107 = scmp.eq.s32.totalorder %s38, 3
      %p108 = por %p106, %p107
      %p110 = scmp.ne.s32.totalorder %s93, %s109
      %p111 = scmp.eq.s32.totalorder %s38, 0
      %p112 = por %p110, %p111
      %s113 = ssub.s32 %s39, %s58
      %p114 = scmp.eq.s32.totalorder %s113, 0
      %s116 = sadd.s32 %s115, 1
      %s117 = scalar_select %p114, %s115, %s116
      %p120 = pneg %p114
      %p121 = scmp.eq.s32.totalorder %s32, 3
      %p122 = por %p120, %p121
      %p123 = scmp.ne.s32.totalorder %s115, %s118
      %p124 = scmp.eq.s32.totalorder %s32, 0
      %p125 = por %p123, %p124
      %p126 = scmp.ne.s32.totalorder %s115, %s118
      %p127 = scmp.eq.s32.totalorder %s37, 3
      %p128 = por %p126, %p127
      %p129 = scmp.ne.s32.totalorder %s118, %s119
      %p130 = scmp.eq.s32.totalorder %s37, 0
      %p131 = por %p129, %p130
      %p132 = scmp.ne.s32.totalorder %s118, %s119
      %p133 = scmp.eq.s32.totalorder %s38, 3
      %p134 = por %p132, %p133
      %p136 = scmp.ne.s32.totalorder %s119, %s135
      %p137 = scmp.eq.s32.totalorder %s38, 0
      %p138 = por %p136, %p137
      %s139 = ssub.s32 %s41, %s50
      %p140 = scmp.eq.s32.totalorder %s139, 0
      %s142 = sadd.s32 %s141, 1
      %s143 = scalar_select %p140, %s141, %s142
      %p146 = pneg %p140
      %p147 = scmp.eq.s32.totalorder %s32, 3
      %p148 = por %p146, %p147
      %p149 = scmp.ne.s32.totalorder %s141, %s144
      %p150 = scmp.eq.s32.totalorder %s32, 0
      %p151 = por %p149, %p150
      %p152 = scmp.ne.s32.totalorder %s141, %s144
      %p153 = scmp.eq.s32.totalorder %s37, 3
      %p154 = por %p152, %p153
      %p155 = scmp.ne.s32.totalorder %s144, %s145
      %p156 = scmp.eq.s32.totalorder %s37, 0
      %p157 = por %p155, %p156
      %p158 = scmp.ne.s32.totalorder %s144, %s145
      %p159 = scmp.eq.s32.totalorder %s38, 3
      %p160 = por %p158, %p159
      %p162 = scmp.ne.s32.totalorder %s145, %s161
      %p163 = scmp.eq.s32.totalorder %s38, 0
      %p164 = por %p162, %p163
      %s165 = ssub.s32 %s41, %s50
      %p166 = scmp.eq.s32.totalorder %s165, 0
      %s168 = sadd.s32 %s167, 1
      %s169 = scalar_select %p166, %s167, %s168
      %p172 = pneg %p166
      %p173 = scmp.eq.s32.totalorder %s32, 3
      %p174 = por %p172, %p173
      %p175 = scmp.ne.s32.totalorder %s167, %s170
      %p176 = scmp.eq.s32.totalorder %s32, 0
      %p177 = por %p175, %p176
      %p178 = scmp.ne.s32.totalorder %s167, %s170
      %p179 = scmp.eq.s32.totalorder %s37, 3
      %p180 = por %p178, %p179
      %p181 = scmp.ne.s32.totalorder %s170, %s171
      %p182 = scmp.eq.s32.totalorder %s37, 0
      %p183 = por %p181, %p182
      %p184 = scmp.ne.s32.totalorder %s170, %s171
      %p185 = scmp.eq.s32.totalorder %s38, 3
      %p186 = por %p184, %p185
      %p188 = scmp.ne.s32.totalorder %s171, %s187
      %p189 = scmp.eq.s32.totalorder %s38, 0
      %p190 = por %p188, %p189
      %s191 = ssub.s32 %s41, %s50
      %p192 = scmp.eq.s32.totalorder %s191, 0
      %s194 = sadd.s32 %s193, 1
      %s195 = scalar_select %p192, %s193, %s194
      %p198 = pneg %p192
      %p199 = scmp.eq.s32.totalorder %s32, 3
      %p200 = por %p198, %p199
      %p201 = scmp.ne.s32.totalorder %s193, %s196
      %p202 = scmp.eq.s32.totalorder %s32, 0
      %p203 = por %p201, %p202
      %p204 = scmp.ne.s32.totalorder %s193, %s196
      %p205 = scmp.eq.s32.totalorder %s37, 3
      %p206 = por %p204, %p205
      %p207 = scmp.ne.s32.totalorder %s196, %s197
      %p208 = scmp.eq.s32.totalorder %s37, 0
      %p209 = por %p207, %p208
      %p210 = scmp.ne.s32.totalorder %s196, %s197
      %p211 = scmp.eq.s32.totalorder %s38, 3
      %p212 = por %p210, %p211
      %p214 = scmp.ne.s32.totalorder %s197, %s213
      %p215 = scmp.eq.s32.totalorder %s38, 0
      %p216 = por %p214, %p215
      %s217 = ssub.s32 %s41, %s50
      %p218 = scmp.eq.s32.totalorder %s217, 0
      %s220 = sadd.s32 %s219, 1
      %s221 = scalar_select %p218, %s219, %s220
      %p224 = pneg %p218
      %p225 = scmp.eq.s32.totalorder %s32, 3
      %p226 = por %p224, %p225
      %p227 = scmp.ne.s32.totalorder %s219, %s222
      %p228 = scmp.eq.s32.totalorder %s32, 0
      %p229 = por %p227, %p228
      %p230 = scmp.ne.s32.totalorder %s219, %s222
      %p231 = scmp.eq.s32.totalorder %s37, 3
      %p232 = por %p230, %p231
      %p233 = scmp.ne.s32.totalorder %s222, %s223
      %p234 = scmp.eq.s32.totalorder %s37, 0
      %p235 = por %p233, %p234
      %p236 = scmp.ne.s32.totalorder %s222, %s223
      %p237 = scmp.eq.s32.totalorder %s38, 3
      %p238 = por %p236, %p237
      %p240 = scmp.ne.s32.totalorder %s223, %s239
      %p241 = scmp.eq.s32.totalorder %s38, 0
      %p242 = por %p240, %p241
      %s243 = ssub.s32 %s41, %s50
      %p244 = scmp.eq.s32.totalorder %s243, 0
      %s246 = sadd.s32 %s245, 1
      %s247 = scalar_select %p244, %s245, %s246
      %p250 = pneg %p244
      %p251 = scmp.eq.s32.totalorder %s32, 3
      %p252 = por %p250, %p251
      %p253 = scmp.ne.s32.totalorder %s245, %s248
      %p254 = scmp.eq.s32.totalorder %s32, 0
      %p255 = por %p253, %p254
      %p256 = scmp.ne.s32.totalorder %s245, %s248
      %p257 = scmp.eq.s32.totalorder %s37, 3
      %p258 = por %p256, %p257
      %p259 = scmp.ne.s32.totalorder %s248, %s249
      %p260 = scmp.eq.s32.totalorder %s37, 0
      %p261 = por %p259, %p260
      %p262 = scmp.ne.s32.totalorder %s248, %s249
      %p263 = scmp.eq.s32.totalorder %s38, 3
      %p264 = por %p262, %p263
      %p266 = scmp.ne.s32.totalorder %s249, %s265
      %p267 = scmp.eq.s32.totalorder %s38, 0
      %p268 = por %p266, %p267
      %s269 = ssub.s32 %s41, %s50
      %p270 = scmp.eq.s32.totalorder %s269, 0
      %s272 = sadd.s32 %s271, 1
      %s273 = scalar_select %p270, %s271, %s272
      %p276 = pneg %p270
      %p277 = scmp.eq.s32.totalorder %s32, 3
      %p278 = por %p276, %p277
      %p279 = scmp.ne.s32.totalorder %s271, %s274
      %p280 = scmp.eq.s32.totalorder %s32, 0
      %p281 = por %p279, %p280
      %p282 = scmp.ne.s32.totalorder %s271, %s274
      %p283 = scmp.eq.s32.totalorder %s37, 3
      %p284 = por %p282, %p283
      %p285 = scmp.ne.s32.totalorder %s274, %s275
      %p286 = scmp.eq.s32.totalorder %s37, 0
      %p287 = por %p285, %p286
      %p288 = scmp.ne.s32.totalorder %s274, %s275
      %p289 = scmp.eq.s32.totalorder %s38, 3
      %p290 = por %p288, %p289
      %p292 = scmp.ne.s32.totalorder %s275, %s291
      %p293 = scmp.eq.s32.totalorder %s38, 0
      %p294 = por %p292, %p293
      %s295 = ssub.s32 %s41, %s50
      %p296 = scmp.eq.s32.totalorder %s295, 0
      %s298 = sadd.s32 %s297, 1
      %s299 = scalar_select %p296, %s297, %s298
      %p302 = pneg %p296
      %p303 = scmp.eq.s32.totalorder %s32, 3
      %p304 = por %p302, %p303
      %p305 = scmp.ne.s32.totalorder %s297, %s300
      %p306 = scmp.eq.s32.totalorder %s32, 0
      %p307 = por %p305, %p306
      %p308 = scmp.ne.s32.totalorder %s297, %s300
      %p309 = scmp.eq.s32.totalorder %s37, 3
      %p310 = por %p308, %p309
      %p311 = scmp.ne.s32.totalorder %s300, %s301
      %p312 = scmp.eq.s32.totalorder %s37, 0
      %p313 = por %p311, %p312
      %p314 = scmp.ne.s32.totalorder %s300, %s301
      %p315 = scmp.eq.s32.totalorder %s38, 3
      %p316 = por %p314, %p315
      %p318 = scmp.ne.s32.totalorder %s301, %s317
      %p319 = scmp.eq.s32.totalorder %s38, 0
      %p320 = por %p318, %p319
      %s322 = sadd.s32 %s321, 1
      %p325 = scmp.eq.s32.totalorder %s32, 3
      %p326 = scmp.ne.s32.totalorder %s321, %s323
      %p327 = scmp.eq.s32.totalorder %s32, 0
      %p328 = por %p326, %p327
      %p329 = scmp.ne.s32.totalorder %s321, %s323
      %p330 = scmp.eq.s32.totalorder %s37, 3
      %p331 = por %p329, %p330
      %p332 = scmp.ne.s32.totalorder %s323, %s324
      %p333 = scmp.eq.s32.totalorder %s37, 0
      %p334 = por %p332, %p333
      %p335 = scmp.ne.s32.totalorder %s323, %s324
      %p336 = scmp.eq.s32.totalorder %s38, 3
      %p337 = por %p335, %p336
      %p339 = scmp.ne.s32.totalorder %s324, %s338
      %p340 = scmp.eq.s32.totalorder %s38, 0
      %p341 = por %p339, %p340
      %s342 = ssub.s32 %s39, %s58
      %s343 = ssub.s32 %s40, %s54
      %s344 = sor.u32 %s342, %s343
      %p345 = scmp.eq.s32.totalorder %s344, 0
      %s347 = sadd.s32 %s346, 1
      %s348 = scalar_select %p345, %s346, %s347
      %p351 = pneg %p345
      %p352 = scmp.eq.s32.totalorder %s32, 3
      %p353 = por %p351, %p352
      %p354 = scmp.ne.s32.totalorder %s346, %s349
      %p355 = scmp.eq.s32.totalorder %s32, 0
      %p356 = por %p354, %p355
      %p357 = scmp.ne.s32.totalorder %s346, %s349
      %p358 = scmp.eq.s32.totalorder %s37, 3
      %p359 = por %p357, %p358
      %p360 = scmp.ne.s32.totalorder %s349, %s350
      %p361 = scmp.eq.s32.totalorder %s37, 0
      %p362 = por %p360, %p361
      %p363 = scmp.ne.s32.totalorder %s349, %s350
      %p364 = scmp.eq.s32.totalorder %s38, 3
      %p365 = por %p363, %p364
      %p367 = scmp.ne.s32.totalorder %s350, %s366
      %p368 = scmp.eq.s32.totalorder %s38, 0
      %p369 = por %p367, %p368
      %p370 = scmp.le.s32.totalorder 1, %s32
      %p371 = scmp.lt.s32.totalorder %s32, 5
      %p372 = pnand %p370, %p371
      %p373 = pneg %p372
      // Predicated region
      $region9: #{multi_head_attention.1} parent=5 // pred_check
        _
      $region10: #{multi_head_attention.1} parent=5 // pred_check_branch
        %375 = sbr.rel (%p372) target = $region12
      $region11: #{multi_head_attention.1} parent=5 // pred_region
        %s376 = ssub.s32 %s32, 1
        // Predicated region
        $region13: #{multi_head_attention.1} parent=11 // pred_check
          %p377 = pneg %p334
        $region14: #{multi_head_attention.1} parent=11 // pred_check_branch
          %379 = sbr.rel (%p377) target = $region16
        $region15: #{multi_head_attention.1} parent=11 // pred_region
          _
        $region16: #{multi_head_attention.1} parent=11 // pred_fallthru
          _
      $region12: #{multi_head_attention.1} parent=5 // pred_fallthru
        _
      %p380 = scmp.lt.s32.totalorder %s32, 4
      // Predicated region
      $region17: #{multi_head_attention.1} parent=5 // pred_check
        %p381 = pneg %p380
      $region18: #{multi_head_attention.1} parent=5 // pred_check_branch
        %383 = sbr.rel (%p381) target = $region20
      $region19: #{multi_head_attention.1} parent=5 // pred_region
        // Predicated region
        $region21: #{multi_head_attention.1} parent=19 // pred_check
          %p384 = pneg %p73
        $region22: #{multi_head_attention.1} parent=19 // pred_check_branch
          %386 = sbr.rel (%p384) target = $region24
        $region23: #{multi_head_attention.1} parent=19 // pred_region
          %s387 = sand.u32 %s63, 1
          %s388 = scalar_lea.sflag [#allocation4], %s387
          %s389 = sand.u32 %s63, 1
          %s390 = smul.addr %s389, 256
          %s391 = scalar_lea.vmem [#allocation3], %s390
          %s392 = smul.u32 16, %s40
          %s394 = ssub.s32 4096, 4096
          %395 = vsyncadd %s388, %s394
          %s396 = smul.addr %s392, 2
          %s397 = smul.addr %s39, 32
          %s398 = sadd.s32 %s396, %s397
          %s399 = smul.addr %s398, 128
          %s400 = scalar_lea.hbm %s0, %s399
          %s401 = sshll.u32 %s391, 4
          %s402 = int_to_ptr.vmem [resolvable:$true] %s401
          %407 = dma.hbm_to_vmem [thread:$0]  %s400, 4096, %s402, %s388, 256, 256, 16
        $region24: #{multi_head_attention.1} parent=19 // pred_fallthru
          _
        // Predicated region
        $region25: #{multi_head_attention.1} parent=19 // pred_check
          %p408 = pneg %p99
        $region26: #{multi_head_attention.1} parent=19 // pred_check_branch
          %410 = sbr.rel (%p408) target = $region28
        $region27: #{multi_head_attention.1} parent=19 // pred_region
          %s411 = sand.u32 %s32, 1
          %s412 = scalar_lea.sflag [#allocation7], %s411
          %s413 = sand.u32 %s89, 1
          %s414 = smul.addr %s413, 256
          %s415 = scalar_lea.vmem [#allocation6], %s414
          %s417 = ssub.s32 4096, 4096
          %418 = vsyncadd %s412, %s417
          %s419 = smul.addr %s39, 32
          %s420 = smul.addr %s419, 128
          %s421 = scalar_lea.hbm %s1, %s420
          %s422 = sshll.u32 %s415, 4
          %s423 = int_to_ptr.vmem [resolvable:$true] %s422
          %428 = dma.hbm_to_vmem [thread:$0]  %s421, 4096, %s423, %s412, 256, 256, 16
        $region28: #{multi_head_attention.1} parent=19 // pred_fallthru
          _
        // Predicated region
        $region29: #{multi_head_attention.1} parent=19 // pred_check
          %p429 = pneg %p125
        $region30: #{multi_head_attention.1} parent=19 // pred_check_branch
          %431 = sbr.rel (%p429) target = $region32
        $region31: #{multi_head_attention.1} parent=19 // pred_region
          %s432 = sand.u32 %s32, 1
          %s433 = scalar_lea.sflag [#allocation7], %s432
          %s434 = sand.u32 %s115, 1
          %s435 = smul.addr %s434, 256
          %s436 = scalar_lea.vmem [#allocation8], %s435
          %s438 = ssub.s32 4096, 4096
          %439 = vsyncadd %s433, %s438
          %s440 = smul.addr %s39, 32
          %s441 = smul.addr %s440, 128
          %s442 = scalar_lea.hbm %s2, %s441
          %s443 = sshll.u32 %s436, 4
          %s444 = int_to_ptr.vmem [resolvable:$true] %s443
          %449 = dma.hbm_to_vmem [thread:$0]  %s442, 4096, %s444, %s433, 256, 256, 16
        $region32: #{multi_head_attention.1} parent=19 // pred_fallthru
          _
        // Predicated region
        $region33: #{multi_head_attention.1} parent=19 // pred_check
          %p450 = pneg %p151
        $region34: #{multi_head_attention.1} parent=19 // pred_check_branch
          %452 = sbr.rel (%p450) target = $region36
        $region35: #{multi_head_attention.1} parent=19 // pred_region
          %s453 = sand.u32 %s32, 1
          %s454 = scalar_lea.sflag [#allocation10], %s453
          %s455 = sand.u32 %s141, 1
          %s456 = smul.addr %s455, 256
          %s457 = scalar_lea.vmem [#allocation9], %s456
          %s459 = ssub.s32 4096, 4096
          %460 = vsyncadd %s454, %s459
          %s461 = smul.addr %s41, 128
          %s462 = scalar_lea.hbm %s3, %s461
          %s463 = sshll.u32 %s457, 4
          %s464 = int_to_ptr.vmem [resolvable:$true] %s463
          %469 = dma.hbm_to_vmem [thread:$0]  %s462, 4096, %s464, %s454, 256, 128, 8
        $region36: #{multi_head_attention.1} parent=19 // pred_fallthru
          _
        // Predicated region
        $region37: #{multi_head_attention.1} parent=19 // pred_check
          %p470 = pneg %p177
        $region38: #{multi_head_attention.1} parent=19 // pred_check_branch
          %472 = sbr.rel (%p470) target = $region40
        $region39: #{multi_head_attention.1} parent=19 // pred_region
          %p473 = scmp.lt.s32.totalorder %s41, 1
          %s474 = scalar_select %p473, %s41, 1
          %s475 = scalar_lea.vmem %s4, %s474
        $region40: #{multi_head_attention.1} parent=19 // pred_fallthru
          _
        // Predicated region
        $region41: #{multi_head_attention.1} parent=19 // pred_check
          %p476 = pneg %p203
        $region42: #{multi_head_attention.1} parent=19 // pred_check_branch
          %478 = sbr.rel (%p476) target = $region44
        $region43: #{multi_head_attention.1} parent=19 // pred_region
          %s479 = sand.u32 %s32, 1
          %s480 = scalar_lea.sflag [#allocation10], %s479
          %s481 = sand.u32 %s193, 1
          %s482 = smul.addr %s481, 256
          %s483 = scalar_lea.vmem [#allocation11], %s482
          %s485 = ssub.s32 4096, 4096
          %486 = vsyncadd %s480, %s485
          %s487 = smul.addr %s41, 128
          %s488 = scalar_lea.hbm %s5, %s487
          %s489 = sshll.u32 %s483, 4
          %s490 = int_to_ptr.vmem [resolvable:$true] %s489
          %495 = dma.hbm_to_vmem [thread:$0]  %s488, 4096, %s490, %s480, 256, 128, 8
        $region44: #{multi_head_attention.1} parent=19 // pred_fallthru
          _
        // Predicated region
        $region45: #{multi_head_attention.1} parent=19 // pred_check
          %p496 = pneg %p229
        $region46: #{multi_head_attention.1} parent=19 // pred_check_branch
          %498 = sbr.rel (%p496) target = $region48
        $region47: #{multi_head_attention.1} parent=19 // pred_region
          %p499 = scmp.lt.s32.totalorder %s41, 1
          %s500 = scalar_select %p499, %s41, 1
          %s501 = scalar_lea.vmem %s6, %s500
        $region48: #{multi_head_attention.1} parent=19 // pred_fallthru
          _
        // Predicated region
        $region49: #{multi_head_attention.1} parent=19 // pred_check
          %p502 = pneg %p255
        $region50: #{multi_head_attention.1} parent=19 // pred_check_branch
          %504 = sbr.rel (%p502) target = $region52
        $region51: #{multi_head_attention.1} parent=19 // pred_region
          %s505 = sand.u32 %s32, 1
          %s506 = scalar_lea.sflag [#allocation13], %s505
          %s507 = sand.u32 %s245, 1
          %s508 = smul.addr %s507, 256
          %s509 = scalar_lea.vmem [#allocation12], %s508
          %s511 = ssub.s32 4096, 4096
          %512 = vsyncadd %s506, %s511
          %s513 = smul.addr %s41, 128
          %s514 = scalar_lea.hbm %s7, %s513
          %s515 = sshll.u32 %s509, 4
          %s516 = int_to_ptr.vmem [resolvable:$true] %s515
          %521 = dma.hbm_to_vmem [thread:$0]  %s514, 4096, %s516, %s506, 256, 128, 8
        $region52: #{multi_head_attention.1} parent=19 // pred_fallthru
          _
        // Predicated region
        $region53: #{multi_head_attention.1} parent=19 // pred_check
          %p522 = pneg %p281
        $region54: #{multi_head_attention.1} parent=19 // pred_check_branch
          %524 = sbr.rel (%p522) target = $region56
        $region55: #{multi_head_attention.1} parent=19 // pred_region
          %p525 = scmp.lt.s32.totalorder %s41, 1
          %s526 = scalar_select %p525, %s41, 1
          %s527 = scalar_lea.vmem %s8, %s526
        $region56: #{multi_head_attention.1} parent=19 // pred_fallthru
          _
        // Predicated region
        $region57: #{multi_head_attention.1} parent=19 // pred_check
          %p528 = pneg %p307
        $region58: #{multi_head_attention.1} parent=19 // pred_check_branch
          %530 = sbr.rel (%p528) target = $region60
        $region59: #{multi_head_attention.1} parent=19 // pred_region
          %s531 = sand.u32 %s32, 1
          %s532 = scalar_lea.sflag [#allocation13], %s531
          %s533 = sand.u32 %s297, 1
          %s534 = smul.addr %s533, 256
          %s535 = scalar_lea.vmem [#allocation14], %s534
          %s536 = smul.u32 16, %s41
          %s538 = ssub.s32 4096, 4096
          %539 = vsyncadd %s532, %s538
          %s540 = smul.addr %s536, 2
          %s541 = smul.addr %s540, 128
          %s542 = scalar_lea.hbm %s9, %s541
          %s543 = sshll.u32 %s535, 4
          %s544 = int_to_ptr.vmem [resolvable:$true] %s543
          %549 = dma.hbm_to_vmem [thread:$0]  %s542, 4096, %s544, %s532, 256, 256, 16
        $region60: #{multi_head_attention.1} parent=19 // pred_fallthru
          _
      $region20: #{multi_head_attention.1} parent=5 // pred_fallthru
        _
      %p550 = scmp.le.s32.totalorder 1, %s32
      %p551 = scmp.lt.s32.totalorder %s32, 5
      %p552 = pnand %p550, %p551
      %p553 = pneg %p552
      // Predicated region
      $region61: #{multi_head_attention.1} parent=5 // pred_check
        _
      $region62: #{multi_head_attention.1} parent=5 // pred_check_branch
        %555 = sbr.rel (%p552) target = $region64
      $region63: #{multi_head_attention.1} parent=5 // pred_region
        %s556 = ssub.s32 %s32, 1
        %s557 = sand.u32 %s66, 1
        %s558 = scalar_lea.sflag [#allocation4], %s557
        %s559 = sand.u32 %s66, 1
        %s560 = smul.addr %s559, 256
        %s561 = scalar_lea.vmem [#allocation3], %s560
        // Predicated region
        $region65: #{multi_head_attention.1} parent=63 // pred_check
          %p562 = pneg %p79
        $region66: #{multi_head_attention.1} parent=63 // pred_check_branch
          %564 = sbr.rel (%p562) target = $region68
        $region67: #{multi_head_attention.1} parent=63 // pred_region
          %565 = dma.done %s558, 4096
        $region68: #{multi_head_attention.1} parent=63 // pred_fallthru
          _
        %s566 = sand.u32 %s37, 1
        %s567 = scalar_lea.sflag [#allocation7], %s566
        %s568 = sand.u32 %s92, 1
        %s569 = smul.addr %s568, 256
        %s570 = scalar_lea.vmem [#allocation6], %s569
        // Predicated region
        $region69: #{multi_head_attention.1} parent=63 // pred_check
          %p571 = pneg %p105
        $region70: #{multi_head_attention.1} parent=63 // pred_check_branch
          %573 = sbr.rel (%p571) target = $region72
        $region71: #{multi_head_attention.1} parent=63 // pred_region
          %574 = dma.done %s567, 4096
        $region72: #{multi_head_attention.1} parent=63 // pred_fallthru
          _
        %s575 = sand.u32 %s37, 1
        %s576 = scalar_lea.sflag [#allocation7], %s575
        %s577 = sand.u32 %s118, 1
        %s578 = smul.addr %s577, 256
        %s579 = scalar_lea.vmem [#allocation8], %s578
        // Predicated region
        $region73: #{multi_head_attention.1} parent=63 // pred_check
          %p580 = pneg %p131
        $region74: #{multi_head_attention.1} parent=63 // pred_check_branch
          %582 = sbr.rel (%p580) target = $region76
        $region75: #{multi_head_attention.1} parent=63 // pred_region
          %583 = dma.done %s576, 4096
        $region76: #{multi_head_attention.1} parent=63 // pred_fallthru
          _
        %s584 = sand.u32 %s37, 1
        %s585 = scalar_lea.sflag [#allocation10], %s584
        %s586 = sand.u32 %s144, 1
        %s587 = smul.addr %s586, 256
        %s588 = scalar_lea.vmem [#allocation9], %s587
        // Predicated region
        $region77: #{multi_head_attention.1} parent=63 // pred_check
          %p589 = pneg %p157
        $region78: #{multi_head_attention.1} parent=63 // pred_check_branch
          %591 = sbr.rel (%p589) target = $region80
        $region79: #{multi_head_attention.1} parent=63 // pred_region
          %592 = dma.done %s585, 4096
        $region80: #{multi_head_attention.1} parent=63 // pred_fallthru
          _
        %s593 = sand.u32 %s37, 1
        %s594 = scalar_lea.sflag [#allocation10], %s593
        %s595 = sand.u32 %s196, 1
        %s596 = smul.addr %s595, 256
        %s597 = scalar_lea.vmem [#allocation11], %s596
        // Predicated region
        $region81: #{multi_head_attention.1} parent=63 // pred_check
          %p598 = pneg %p209
        $region82: #{multi_head_attention.1} parent=63 // pred_check_branch
          %600 = sbr.rel (%p598) target = $region84
        $region83: #{multi_head_attention.1} parent=63 // pred_region
          %601 = dma.done %s594, 4096
        $region84: #{multi_head_attention.1} parent=63 // pred_fallthru
          _
        %s602 = sand.u32 %s37, 1
        %s603 = scalar_lea.sflag [#allocation13], %s602
        %s604 = sand.u32 %s248, 1
        %s605 = smul.addr %s604, 256
        %s606 = scalar_lea.vmem [#allocation12], %s605
        // Predicated region
        $region85: #{multi_head_attention.1} parent=63 // pred_check
          %p607 = pneg %p261
        $region86: #{multi_head_attention.1} parent=63 // pred_check_branch
          %609 = sbr.rel (%p607) target = $region88
        $region87: #{multi_head_attention.1} parent=63 // pred_region
          %610 = dma.done %s603, 4096
        $region88: #{multi_head_attention.1} parent=63 // pred_fallthru
          _
        %s611 = sand.u32 %s37, 1
        %s612 = scalar_lea.sflag [#allocation13], %s611
        %s613 = sand.u32 %s300, 1
        %s614 = smul.addr %s613, 256
        %s615 = scalar_lea.vmem [#allocation14], %s614
        // Predicated region
        $region89: #{multi_head_attention.1} parent=63 // pred_check
          %p616 = pneg %p313
        $region90: #{multi_head_attention.1} parent=63 // pred_check_branch
          %618 = sbr.rel (%p616) target = $region92
        $region91: #{multi_head_attention.1} parent=63 // pred_region
          %619 = dma.done %s612, 4096
        $region92: #{multi_head_attention.1} parent=63 // pred_fallthru
          _
        %s620 = sand.u32 %s66, 1
        %s621 = scalar_lea.sflag [#allocation4], %s620
        %s622 = sand.u32 %s66, 1
        %s623 = smul.addr %s622, 256
        %s624 = scalar_lea.vmem [#allocation3], %s623
        %p625 = pneg %p79
        %p626 = pneg %p76
        %s627 = sand.u32 %s37, 1
        %s628 = scalar_lea.sflag [#allocation7], %s627
        %s629 = sand.u32 %s92, 1
        %s630 = smul.addr %s629, 256
        %s631 = scalar_lea.vmem [#allocation6], %s630
        %p632 = pneg %p105
        %p633 = pneg %p102
        %s634 = sand.u32 %s37, 1
        %s635 = scalar_lea.sflag [#allocation7], %s634
        %s636 = sand.u32 %s118, 1
        %s637 = smul.addr %s636, 256
        %s638 = scalar_lea.vmem [#allocation8], %s637
        %p639 = pneg %p131
        %p640 = pneg %p128
        %s641 = sand.u32 %s37, 1
        %s642 = scalar_lea.sflag [#allocation10], %s641
        %s643 = sand.u32 %s144, 1
        %s644 = smul.addr %s643, 256
        %s645 = scalar_lea.vmem [#allocation9], %s644
        %p646 = pneg %p157
        %p647 = pneg %p154
        %p648 = scmp.lt.s32.totalorder %s44, 1
        %s649 = scalar_select %p648, %s44, 1
        %s650 = scalar_lea.vmem %s4, %s649
        %p651 = pneg %p183
        %p652 = pneg %p180
        %s653 = sand.u32 %s37, 1
        %s654 = scalar_lea.sflag [#allocation10], %s653
        %s655 = sand.u32 %s196, 1
        %s656 = smul.addr %s655, 256
        %s657 = scalar_lea.vmem [#allocation11], %s656
        %p658 = pneg %p209
        %p659 = pneg %p206
        %p660 = scmp.lt.s32.totalorder %s44, 1
        %s661 = scalar_select %p660, %s44, 1
        %s662 = scalar_lea.vmem %s6, %s661
        %p663 = pneg %p235
        %p664 = pneg %p232
        %s665 = sand.u32 %s37, 1
        %s666 = scalar_lea.sflag [#allocation13], %s665
        %s667 = sand.u32 %s248, 1
        %s668 = smul.addr %s667, 256
        %s669 = scalar_lea.vmem [#allocation12], %s668
        %p670 = pneg %p261
        %p671 = pneg %p258
        %p672 = scmp.lt.s32.totalorder %s44, 1
        %s673 = scalar_select %p672, %s44, 1
        %s674 = scalar_lea.vmem %s8, %s673
        %p675 = pneg %p287
        %p676 = pneg %p284
        %s677 = sand.u32 %s37, 1
        %s678 = scalar_lea.sflag [#allocation13], %s677
        %s679 = sand.u32 %s300, 1
        %s680 = smul.addr %s679, 256
        %s681 = scalar_lea.vmem [#allocation14], %s680
        %p682 = pneg %p313
        %p683 = pneg %p310
        %p684 = pneg %p334
        %p685 = pneg %p331
        %p686 = pneg %p362
        %p687 = pneg %p359
        %s688 = sand.u32 %s349, 1
        %s689 = scalar_lea.sflag [#allocation5], %s688
        %s690 = sand.u32 %s349, 1
        %s691 = smul.addr %s690, 256
        %s692 = scalar_lea.vmem [#allocation15], %s691
        %s693 = smul.u32 16, %s43
        %p694 = scmp.lt.s32.totalorder %s44, 1
        %s695 = scalar_select %p694, %s44, 1
        %s696 = scalar_lea.vmem %s4, %s695
        %p697 = scmp.lt.s32.totalorder %s44, 1
        %s698 = scalar_select %p697, %s44, 1
        %s699 = scalar_lea.vmem %s6, %s698
        %p700 = scmp.lt.s32.totalorder %s44, 1
        %s701 = scalar_select %p700, %s44, 1
        %s702 = scalar_lea.vmem %s8, %s701
        %s703 = smul.u32 16, %s44
        %s704 = smul.u32 16, %s43
        %p706 = scmp.eq.s32.totalorder %s44, 0
        // Predicated region
        $region93: #{multi_head_attention.1} parent=63 // pred_check
          %p707 = pneg %p706
        $region94: #{multi_head_attention.1} parent=63 // pred_check_branch
          %709 = sbr.rel (%p707) target = $region96
        $region95: #{multi_head_attention.1} parent=63 // pred_region
          %710 = vst [vmem:[#allocation2] sm:$0xff] 0.0
          %711 = vst [vmem:[#allocation2 + $0x8] sm:$0xff] 0.0
          %712 = vst [vmem:[#allocation2 + $0x10] sm:$0xff] 0.0
          %713 = vst [vmem:[#allocation2 + $0x18] sm:$0xff] 0.0
          %714 = vst [vmem:[#allocation2 + $0x20] sm:$0xff] 0.0
          %715 = vst [vmem:[#allocation2 + $0x28] sm:$0xff] 0.0
          %716 = vst [vmem:[#allocation2 + $0x30] sm:$0xff] 0.0
          %717 = vst [vmem:[#allocation2 + $0x38] sm:$0xff] 0.0
          %718 = vst [vmem:[#allocation2 + $0x40] sm:$0xff] 0.0
          %719 = vst [vmem:[#allocation2 + $0x48] sm:$0xff] 0.0
          %720 = vst [vmem:[#allocation2 + $0x50] sm:$0xff] 0.0
          %721 = vst [vmem:[#allocation2 + $0x58] sm:$0xff] 0.0
          %722 = vst [vmem:[#allocation2 + $0x60] sm:$0xff] 0.0
          %723 = vst [vmem:[#allocation2 + $0x68] sm:$0xff] 0.0
          %724 = vst [vmem:[#allocation2 + $0x70] sm:$0xff] 0.0
          %725 = vst [vmem:[#allocation2 + $0x78] sm:$0xff] 0.0
          %726 = vst [vmem:[#allocation2 + $0x80] sm:$0xff] 0.0
          %727 = vst [vmem:[#allocation2 + $0x88] sm:$0xff] 0.0
          %728 = vst [vmem:[#allocation2 + $0x90] sm:$0xff] 0.0
          %729 = vst [vmem:[#allocation2 + $0x98] sm:$0xff] 0.0
          %730 = vst [vmem:[#allocation2 + $0xa0] sm:$0xff] 0.0
          %731 = vst [vmem:[#allocation2 + $0xa8] sm:$0xff] 0.0
          %732 = vst [vmem:[#allocation2 + $0xb0] sm:$0xff] 0.0
          %733 = vst [vmem:[#allocation2 + $0xb8] sm:$0xff] 0.0
          %734 = vst [vmem:[#allocation2 + $0xc0] sm:$0xff] 0.0
          %735 = vst [vmem:[#allocation2 + $0xc8] sm:$0xff] 0.0
          %736 = vst [vmem:[#allocation2 + $0xd0] sm:$0xff] 0.0
          %737 = vst [vmem:[#allocation2 + $0xd8] sm:$0xff] 0.0
          %738 = vst [vmem:[#allocation2 + $0xe0] sm:$0xff] 0.0
          %739 = vst [vmem:[#allocation2 + $0xe8] sm:$0xff] 0.0
          %740 = vst [vmem:[#allocation2 + $0xf0] sm:$0xff] 0.0
          %741 = vst [vmem:[#allocation2 + $0xf8] sm:$0xff] 0.0
        $region96: #{multi_head_attention.1} parent=63 // pred_fallthru
          _
        %v742 = vld [vmem:[%s561] sm:$0xff]
        %v743 = vld [vmem:[%s561 + $0x8] sm:$0xff]
        %v744 = vld [vmem:[%s561 + $0x10] sm:$0xff]
        %v745 = vld [vmem:[%s561 + $0x18] sm:$0xff]
        %v746 = vld [vmem:[%s561 + $0x20] sm:$0xff]
        %v747 = vld [vmem:[%s561 + $0x28] sm:$0xff]
        %v748 = vld [vmem:[%s561 + $0x30] sm:$0xff]
        %v749 = vld [vmem:[%s561 + $0x38] sm:$0xff]
        %v750 = vld [vmem:[%s561 + $0x40] sm:$0xff]
        %v751 = vld [vmem:[%s561 + $0x48] sm:$0xff]
        %v752 = vld [vmem:[%s561 + $0x50] sm:$0xff]
        %v753 = vld [vmem:[%s561 + $0x58] sm:$0xff]
        %v754 = vld [vmem:[%s561 + $0x60] sm:$0xff]
        %v755 = vld [vmem:[%s561 + $0x68] sm:$0xff]
        %v756 = vld [vmem:[%s561 + $0x70] sm:$0xff]
        %v757 = vld [vmem:[%s561 + $0x78] sm:$0xff]
        %v758 = vld [vmem:[%s561 + $0x80] sm:$0xff]
        %v759 = vld [vmem:[%s561 + $0x88] sm:$0xff]
        %v760 = vld [vmem:[%s561 + $0x90] sm:$0xff]
        %v761 = vld [vmem:[%s561 + $0x98] sm:$0xff]
        %v762 = vld [vmem:[%s561 + $0xa0] sm:$0xff]
        %v763 = vld [vmem:[%s561 + $0xa8] sm:$0xff]
        %v764 = vld [vmem:[%s561 + $0xb0] sm:$0xff]
        %v765 = vld [vmem:[%s561 + $0xb8] sm:$0xff]
        %v766 = vld [vmem:[%s561 + $0xc0] sm:$0xff]
        %v767 = vld [vmem:[%s561 + $0xc8] sm:$0xff]
        %v768 = vld [vmem:[%s561 + $0xd0] sm:$0xff]
        %v769 = vld [vmem:[%s561 + $0xd8] sm:$0xff]
        %v770 = vld [vmem:[%s561 + $0xe0] sm:$0xff]
        %v771 = vld [vmem:[%s561 + $0xe8] sm:$0xff]
        %v772 = vld [vmem:[%s561 + $0xf0] sm:$0xff]
        %v773 = vld [vmem:[%s561 + $0xf8] sm:$0xff]
        %v774 = vpack.c.bf16 %v744, %v742
        %v775 = vpack.c.bf16 %v745, %v743
        %v776 = vpack.c.bf16 %v748, %v746
        %v777 = vpack.c.bf16 %v749, %v747
        %v778 = vpack.c.bf16 %v752, %v750
        %v779 = vpack.c.bf16 %v753, %v751
        %v780 = vpack.c.bf16 %v756, %v754
        %v781 = vpack.c.bf16 %v757, %v755
        %v782 = vpack.c.bf16 %v760, %v758
        %v783 = vpack.c.bf16 %v761, %v759
        %v784 = vpack.c.bf16 %v764, %v762
        %v785 = vpack.c.bf16 %v765, %v763
        %v786 = vpack.c.bf16 %v768, %v766
        %v787 = vpack.c.bf16 %v769, %v767
        %v788 = vpack.c.bf16 %v772, %v770
        %v789 = vpack.c.bf16 %v773, %v771
        %v790 = vld [vmem:[%s570] sm:$0xff]
        %v791 = vld [vmem:[%s570 + $0x8] sm:$0xff]
        %v792 = vld [vmem:[%s570 + $0x10] sm:$0xff]
        %v793 = vld [vmem:[%s570 + $0x18] sm:$0xff]
        %v794 = vld [vmem:[%s570 + $0x20] sm:$0xff]
        %v795 = vld [vmem:[%s570 + $0x28] sm:$0xff]
        %v796 = vld [vmem:[%s570 + $0x30] sm:$0xff]
        %v797 = vld [vmem:[%s570 + $0x38] sm:$0xff]
        %v798 = vld [vmem:[%s570 + $0x40] sm:$0xff]
        %v799 = vld [vmem:[%s570 + $0x48] sm:$0xff]
        %v800 = vld [vmem:[%s570 + $0x50] sm:$0xff]
        %v801 = vld [vmem:[%s570 + $0x58] sm:$0xff]
        %v802 = vld [vmem:[%s570 + $0x60] sm:$0xff]
        %v803 = vld [vmem:[%s570 + $0x68] sm:$0xff]
        %v804 = vld [vmem:[%s570 + $0x70] sm:$0xff]
        %v805 = vld [vmem:[%s570 + $0x78] sm:$0xff]
        %v806 = vld [vmem:[%s570 + $0x80] sm:$0xff]
        %v807 = vld [vmem:[%s570 + $0x88] sm:$0xff]
        %v808 = vld [vmem:[%s570 + $0x90] sm:$0xff]
        %v809 = vld [vmem:[%s570 + $0x98] sm:$0xff]
        %v810 = vld [vmem:[%s570 + $0xa0] sm:$0xff]
        %v811 = vld [vmem:[%s570 + $0xa8] sm:$0xff]
        %v812 = vld [vmem:[%s570 + $0xb0] sm:$0xff]
        %v813 = vld [vmem:[%s570 + $0xb8] sm:$0xff]
        %v814 = vld [vmem:[%s570 + $0xc0] sm:$0xff]
        %v815 = vld [vmem:[%s570 + $0xc8] sm:$0xff]
        %v816 = vld [vmem:[%s570 + $0xd0] sm:$0xff]
        %v817 = vld [vmem:[%s570 + $0xd8] sm:$0xff]
        %v818 = vld [vmem:[%s570 + $0xe0] sm:$0xff]
        %v819 = vld [vmem:[%s570 + $0xe8] sm:$0xff]
        %v820 = vld [vmem:[%s570 + $0xf0] sm:$0xff]
        %v821 = vld [vmem:[%s570 + $0xf8] sm:$0xff]
        %v822 = vpack.c.bf16 %v792, %v790
        %v823 = vpack.c.bf16 %v793, %v791
        %v824 = vpack.c.bf16 %v796, %v794
        %v825 = vpack.c.bf16 %v797, %v795
        %v826 = vpack.c.bf16 %v800, %v798
        %v827 = vpack.c.bf16 %v801, %v799
        %v828 = vpack.c.bf16 %v804, %v802
        %v829 = vpack.c.bf16 %v805, %v803
        %v830 = vpack.c.bf16 %v808, %v806
        %v831 = vpack.c.bf16 %v809, %v807
        %v832 = vpack.c.bf16 %v812, %v810
        %v833 = vpack.c.bf16 %v813, %v811
        %v834 = vpack.c.bf16 %v816, %v814
        %v835 = vpack.c.bf16 %v817, %v815
        %v836 = vpack.c.bf16 %v820, %v818
        %v837 = vpack.c.bf16 %v821, %v819
        %v838 = vld [vmem:[%s579] sm:$0xff]
        %v839 = vld [vmem:[%s579 + $0x8] sm:$0xff]
        %v840 = vld [vmem:[%s579 + $0x10] sm:$0xff]
        %v841 = vld [vmem:[%s579 + $0x18] sm:$0xff]
        %v842 = vld [vmem:[%s579 + $0x20] sm:$0xff]
        %v843 = vld [vmem:[%s579 + $0x28] sm:$0xff]
        %v844 = vld [vmem:[%s579 + $0x30] sm:$0xff]
        %v845 = vld [vmem:[%s579 + $0x38] sm:$0xff]
        %v846 = vld [vmem:[%s579 + $0x40] sm:$0xff]
        %v847 = vld [vmem:[%s579 + $0x48] sm:$0xff]
        %v848 = vld [vmem:[%s579 + $0x50] sm:$0xff]
        %v849 = vld [vmem:[%s579 + $0x58] sm:$0xff]
        %v850 = vld [vmem:[%s579 + $0x60] sm:$0xff]
        %v851 = vld [vmem:[%s579 + $0x68] sm:$0xff]
        %v852 = vld [vmem:[%s579 + $0x70] sm:$0xff]
        %v853 = vld [vmem:[%s579 + $0x78] sm:$0xff]
        %v854 = vld [vmem:[%s579 + $0x80] sm:$0xff]
        %v855 = vld [vmem:[%s579 + $0x88] sm:$0xff]
        %v856 = vld [vmem:[%s579 + $0x90] sm:$0xff]
        %v857 = vld [vmem:[%s579 + $0x98] sm:$0xff]
        %v858 = vld [vmem:[%s579 + $0xa0] sm:$0xff]
        %v859 = vld [vmem:[%s579 + $0xa8] sm:$0xff]
        %v860 = vld [vmem:[%s579 + $0xb0] sm:$0xff]
        %v861 = vld [vmem:[%s579 + $0xb8] sm:$0xff]
        %v862 = vld [vmem:[%s579 + $0xc0] sm:$0xff]
        %v863 = vld [vmem:[%s579 + $0xc8] sm:$0xff]
        %v864 = vld [vmem:[%s579 + $0xd0] sm:$0xff]
        %v865 = vld [vmem:[%s579 + $0xd8] sm:$0xff]
        %v866 = vld [vmem:[%s579 + $0xe0] sm:$0xff]
        %v867 = vld [vmem:[%s579 + $0xe8] sm:$0xff]
        %v868 = vld [vmem:[%s579 + $0xf0] sm:$0xff]
        %v869 = vld [vmem:[%s579 + $0xf8] sm:$0xff]
        %v870 = vpack.c.bf16 %v840, %v838
        %v871 = vpack.c.bf16 %v841, %v839
        %v872 = vpack.c.bf16 %v844, %v842
        %v873 = vpack.c.bf16 %v845, %v843
        %v874 = vpack.c.bf16 %v848, %v846
        %v875 = vpack.c.bf16 %v849, %v847
        %v876 = vpack.c.bf16 %v852, %v850
        %v877 = vpack.c.bf16 %v853, %v851
        %v878 = vpack.c.bf16 %v856, %v854
        %v879 = vpack.c.bf16 %v857, %v855
        %v880 = vpack.c.bf16 %v860, %v858
        %v881 = vpack.c.bf16 %v861, %v859
        %v882 = vpack.c.bf16 %v864, %v862
        %v883 = vpack.c.bf16 %v865, %v863
        %v884 = vpack.c.bf16 %v868, %v866
        %v885 = vpack.c.bf16 %v869, %v867
        %v886 = vld [vmem:[%s588] sm:$0xff]
        %v887 = vld [vmem:[%s588 + $0x8] sm:$0xff]
        %v888 = vld [vmem:[%s588 + $0x10] sm:$0xff]
        %v889 = vld [vmem:[%s588 + $0x18] sm:$0xff]
        %v890 = vld [vmem:[%s588 + $0x20] sm:$0xff]
        %v891 = vld [vmem:[%s588 + $0x28] sm:$0xff]
        %v892 = vld [vmem:[%s588 + $0x30] sm:$0xff]
        %v893 = vld [vmem:[%s588 + $0x38] sm:$0xff]
        %v894 = vld [vmem:[%s588 + $0x40] sm:$0xff]
        %v895 = vld [vmem:[%s588 + $0x48] sm:$0xff]
        %v896 = vld [vmem:[%s588 + $0x50] sm:$0xff]
        %v897 = vld [vmem:[%s588 + $0x58] sm:$0xff]
        %v898 = vld [vmem:[%s588 + $0x60] sm:$0xff]
        %v899 = vld [vmem:[%s588 + $0x68] sm:$0xff]
        %v900 = vld [vmem:[%s588 + $0x70] sm:$0xff]
        %v901 = vld [vmem:[%s588 + $0x78] sm:$0xff]
        %v902 = vld [vmem:[%s588 + $0x80] sm:$0xff]
        %v903 = vld [vmem:[%s588 + $0x88] sm:$0xff]
        %v904 = vld [vmem:[%s588 + $0x90] sm:$0xff]
        %v905 = vld [vmem:[%s588 + $0x98] sm:$0xff]
        %v906 = vld [vmem:[%s588 + $0xa0] sm:$0xff]
        %v907 = vld [vmem:[%s588 + $0xa8] sm:$0xff]
        %v908 = vld [vmem:[%s588 + $0xb0] sm:$0xff]
        %v909 = vld [vmem:[%s588 + $0xb8] sm:$0xff]
        %v910 = vld [vmem:[%s588 + $0xc0] sm:$0xff]
        %v911 = vld [vmem:[%s588 + $0xc8] sm:$0xff]
        %v912 = vld [vmem:[%s588 + $0xd0] sm:$0xff]
        %v913 = vld [vmem:[%s588 + $0xd8] sm:$0xff]
        %v914 = vld [vmem:[%s588 + $0xe0] sm:$0xff]
        %v915 = vld [vmem:[%s588 + $0xe8] sm:$0xff]
        %v916 = vld [vmem:[%s588 + $0xf0] sm:$0xff]
        %v917 = vld [vmem:[%s588 + $0xf8] sm:$0xff]
        %v918 = vpack.c.bf16 %v887, %v886
        %v919 = vpack.c.bf16 %v889, %v888
        %v920 = vpack.c.bf16 %v891, %v890
        %v921 = vpack.c.bf16 %v893, %v892
        %v922 = vpack.c.bf16 %v895, %v894
        %v923 = vpack.c.bf16 %v897, %v896
        %v924 = vpack.c.bf16 %v899, %v898
        %v925 = vpack.c.bf16 %v901, %v900
        %v926 = vpack.c.bf16 %v903, %v902
        %v927 = vpack.c.bf16 %v905, %v904
        %v928 = vpack.c.bf16 %v907, %v906
        %v929 = vpack.c.bf16 %v909, %v908
        %v930 = vpack.c.bf16 %v911, %v910
        %v931 = vpack.c.bf16 %v913, %v912
        %v932 = vpack.c.bf16 %v915, %v914
        %v933 = vpack.c.bf16 %v917, %v916
        %v934 = vld [vmem:[%s696] sm:$0x1]
        %v936 = vlaneseq
        %v937 = vshrl.u32 %v936, 7
        %v938 = vsub.s32 0, %v937
        %v939 = vrot.slane %v934, %v938
        %941 = vmatprep.subr.bf16.mxu0 0
        %942 = vmatpush1.bf16.msra.mxu0 %v925
        %943 = vmatprep.subr.bf16.mxu0 0
        %944 = vmatpush1.bf16.msra.mxu0 %v924
        %945 = vmatprep.subr.bf16.mxu0 0
        %946 = vmatpush1.bf16.msra.mxu0 %v923
        %947 = vmatprep.subr.bf16.mxu0 0
        %948 = vmatpush1.bf16.msra.mxu0 %v922
        %949 = vmatprep.subr.bf16.mxu0 0
        %950 = vmatpush1.bf16.msra.mxu0 %v921
        %951 = vmatprep.subr.bf16.mxu0 0
        %952 = vmatpush1.bf16.msra.mxu0 %v920
        %953 = vmatprep.subr.bf16.mxu0 0
        %954 = vmatpush1.bf16.msra.mxu0 %v919
        %955 = vmatprep.subr.bf16.mxu0 0
        %956 = vmatpush1.bf16.msra.mxu0 %v918
        %957 = vmatprep.subr.bf16.mxu0 0
        %958 = vmatpush2.bf16.msra.mxu0 %v933
        %959 = vmatprep.subr.bf16.mxu0 0
        %960 = vmatpush2.bf16.msra.mxu0 %v932
        %961 = vmatprep.subr.bf16.mxu0 0
        %962 = vmatpush2.bf16.msra.mxu0 %v931
        %963 = vmatprep.subr.bf16.mxu0 0
        %964 = vmatpush2.bf16.msra.mxu0 %v930
        %965 = vmatprep.subr.bf16.mxu0 0
        %966 = vmatpush2.bf16.msra.mxu0 %v929
        %967 = vmatprep.subr.bf16.mxu0 0
        %968 = vmatpush2.bf16.msra.mxu0 %v928
        %969 = vmatprep.subr.bf16.mxu0 0
        %970 = vmatpush2.bf16.msra.mxu0 %v927
        %971 = vmatprep.subr.bf16.mxu0 0
        %972 = vmatpush2.bf16.msra.mxu0 %v926
        %973 = vmatprep.mubr.bf16.mxu0 %v775
        %974 = vmatmul.mubr.bf16.gmra.mxu0 %v774
        %v975 = vpop.f32.mrf.mxu0
        %v976 = vadd.f32 %v939, %v975
        %v977 = vpop.f32.mrf.mxu0
        %v978 = vpop.f32.mrf.mxu0
        %v979 = vadd.f32 %v939, %v978
        %v980 = vpop.f32.mrf.mxu0
        %981 = vmatprep.mubr.bf16.mxu0 %v777
        %982 = vmatmul.mubr.bf16.gmra.mxu0 %v776
        %v983 = vpop.f32.mrf.mxu0
        %v984 = vadd.f32 %v939, %v983
        %v985 = vpop.f32.mrf.mxu0
        %v986 = vpop.f32.mrf.mxu0
        %v987 = vadd.f32 %v939, %v986
        %v988 = vpop.f32.mrf.mxu0
        %989 = vmatprep.mubr.bf16.mxu0 %v779
        %990 = vmatmul.mubr.bf16.gmra.mxu0 %v778
        %v991 = vpop.f32.mrf.mxu0
        %v992 = vadd.f32 %v939, %v991
        %v993 = vpop.f32.mrf.mxu0
        %v994 = vpop.f32.mrf.mxu0
        %v995 = vadd.f32 %v939, %v994
        %v996 = vpop.f32.mrf.mxu0
        %997 = vmatprep.mubr.bf16.mxu0 %v781
        %998 = vmatmul.mubr.bf16.gmra.mxu0 %v780
        %v999 = vpop.f32.mrf.mxu0
        %v1000 = vadd.f32 %v939, %v999
        %v1001 = vpop.f32.mrf.mxu0
        %v1002 = vpop.f32.mrf.mxu0
        %v1003 = vadd.f32 %v939, %v1002
        %v1004 = vpop.f32.mrf.mxu0
        %1005 = vmatprep.mubr.bf16.mxu0 %v783
        %1006 = vmatmul.mubr.bf16.gmra.mxu0 %v782
        %v1007 = vpop.f32.mrf.mxu0
        %v1008 = vadd.f32 %v939, %v1007
        %v1009 = vpop.f32.mrf.mxu0
        %v1010 = vpop.f32.mrf.mxu0
        %v1011 = vadd.f32 %v939, %v1010
        %v1012 = vpop.f32.mrf.mxu0
        %1013 = vmatprep.mubr.bf16.mxu0 %v785
        %1014 = vmatmul.mubr.bf16.gmra.mxu0 %v784
        %v1015 = vpop.f32.mrf.mxu0
        %v1016 = vadd.f32 %v939, %v1015
        %v1017 = vpop.f32.mrf.mxu0
        %v1018 = vpop.f32.mrf.mxu0
        %v1019 = vadd.f32 %v939, %v1018
        %v1020 = vpop.f32.mrf.mxu0
        %1021 = vmatprep.mubr.bf16.mxu0 %v787
        %1022 = vmatmul.mubr.bf16.gmra.mxu0 %v786
        %v1023 = vpop.f32.mrf.mxu0
        %v1024 = vadd.f32 %v939, %v1023
        %v1025 = vpop.f32.mrf.mxu0
        %v1026 = vpop.f32.mrf.mxu0
        %v1027 = vadd.f32 %v939, %v1026
        %v1028 = vpop.f32.mrf.mxu0
        %1029 = vmatprep.mubr.bf16.mxu0 %v789
        %1030 = vmatmul.mubr.bf16.gmra.mxu0 %v788
        %v1031 = vpop.f32.mrf.mxu0
        %v1032 = vadd.f32 %v939, %v1031
        %v1033 = vpop.f32.mrf.mxu0
        %v1034 = vpop.f32.mrf.mxu0
        %v1035 = vadd.f32 %v939, %v1034
        %v1036 = vpop.f32.mrf.mxu0
        %1037 = vdwg.mxu0
        %v1038 = vmul.f32 %v976, 0.088388346
        %v1039 = vmul.f32 %v979, 0.088388346
        %v1040 = vmul.f32 %v984, 0.088388346
        %v1041 = vmul.f32 %v987, 0.088388346
        %v1042 = vmul.f32 %v992, 0.088388346
        %v1043 = vmul.f32 %v995, 0.088388346
        %v1044 = vmul.f32 %v1000, 0.088388346
        %v1045 = vmul.f32 %v1003, 0.088388346
        %v1046 = vmul.f32 %v1008, 0.088388346
        %v1047 = vmul.f32 %v1011, 0.088388346
        %v1048 = vmul.f32 %v1016, 0.088388346
        %v1049 = vmul.f32 %v1019, 0.088388346
        %v1050 = vmul.f32 %v1024, 0.088388346
        %v1051 = vmul.f32 %v1027, 0.088388346
        %v1052 = vmul.f32 %v1032, 0.088388346
        %v1053 = vmul.f32 %v1035, 0.088388346
        %v1054 = vld [vmem:[%s597] sm:$0xff]
        %v1055 = vld [vmem:[%s597 + $0x8] sm:$0xff]
        %v1056 = vld [vmem:[%s597 + $0x10] sm:$0xff]
        %v1057 = vld [vmem:[%s597 + $0x18] sm:$0xff]
        %v1058 = vld [vmem:[%s597 + $0x20] sm:$0xff]
        %v1059 = vld [vmem:[%s597 + $0x28] sm:$0xff]
        %v1060 = vld [vmem:[%s597 + $0x30] sm:$0xff]
        %v1061 = vld [vmem:[%s597 + $0x38] sm:$0xff]
        %v1062 = vld [vmem:[%s597 + $0x40] sm:$0xff]
        %v1063 = vld [vmem:[%s597 + $0x48] sm:$0xff]
        %v1064 = vld [vmem:[%s597 + $0x50] sm:$0xff]
        %v1065 = vld [vmem:[%s597 + $0x58] sm:$0xff]
        %v1066 = vld [vmem:[%s597 + $0x60] sm:$0xff]
        %v1067 = vld [vmem:[%s597 + $0x68] sm:$0xff]
        %v1068 = vld [vmem:[%s597 + $0x70] sm:$0xff]
        %v1069 = vld [vmem:[%s597 + $0x78] sm:$0xff]
        %v1070 = vld [vmem:[%s597 + $0x80] sm:$0xff]
        %v1071 = vld [vmem:[%s597 + $0x88] sm:$0xff]
        %v1072 = vld [vmem:[%s597 + $0x90] sm:$0xff]
        %v1073 = vld [vmem:[%s597 + $0x98] sm:$0xff]
        %v1074 = vld [vmem:[%s597 + $0xa0] sm:$0xff]
        %v1075 = vld [vmem:[%s597 + $0xa8] sm:$0xff]
        %v1076 = vld [vmem:[%s597 + $0xb0] sm:$0xff]
        %v1077 = vld [vmem:[%s597 + $0xb8] sm:$0xff]
        %v1078 = vld [vmem:[%s597 + $0xc0] sm:$0xff]
        %v1079 = vld [vmem:[%s597 + $0xc8] sm:$0xff]
        %v1080 = vld [vmem:[%s597 + $0xd0] sm:$0xff]
        %v1081 = vld [vmem:[%s597 + $0xd8] sm:$0xff]
        %v1082 = vld [vmem:[%s597 + $0xe0] sm:$0xff]
        %v1083 = vld [vmem:[%s597 + $0xe8] sm:$0xff]
        %v1084 = vld [vmem:[%s597 + $0xf0] sm:$0xff]
        %v1085 = vld [vmem:[%s597 + $0xf8] sm:$0xff]
        %v1086 = vpack.c.bf16 %v1055, %v1054
        %v1087 = vpack.c.bf16 %v1057, %v1056
        %v1088 = vpack.c.bf16 %v1059, %v1058
        %v1089 = vpack.c.bf16 %v1061, %v1060
        %v1090 = vpack.c.bf16 %v1063, %v1062
        %v1091 = vpack.c.bf16 %v1065, %v1064
        %v1092 = vpack.c.bf16 %v1067, %v1066
        %v1093 = vpack.c.bf16 %v1069, %v1068
        %v1094 = vpack.c.bf16 %v1071, %v1070
        %v1095 = vpack.c.bf16 %v1073, %v1072
        %v1096 = vpack.c.bf16 %v1075, %v1074
        %v1097 = vpack.c.bf16 %v1077, %v1076
        %v1098 = vpack.c.bf16 %v1079, %v1078
        %v1099 = vpack.c.bf16 %v1081, %v1080
        %v1100 = vpack.c.bf16 %v1083, %v1082
        %v1101 = vpack.c.bf16 %v1085, %v1084
        %v1102 = vld [vmem:[%s699] sm:$0x1]
        %v1104 = vlaneseq
        %v1105 = vshrl.u32 %v1104, 7
        %v1106 = vsub.s32 0, %v1105
        %v1107 = vrot.slane %v1102, %v1106
        %1109 = vmatprep.subr.bf16.mxu0 0
        %1110 = vmatpush1.bf16.msra.mxu0 %v1093
        %1111 = vmatprep.subr.bf16.mxu0 0
        %1112 = vmatpush1.bf16.msra.mxu0 %v1092
        %1113 = vmatprep.subr.bf16.mxu0 0
        %1114 = vmatpush1.bf16.msra.mxu0 %v1091
        %1115 = vmatprep.subr.bf16.mxu0 0
        %1116 = vmatpush1.bf16.msra.mxu0 %v1090
        %1117 = vmatprep.subr.bf16.mxu0 0
        %1118 = vmatpush1.bf16.msra.mxu0 %v1089
        %1119 = vmatprep.subr.bf16.mxu0 0
        %1120 = vmatpush1.bf16.msra.mxu0 %v1088
        %1121 = vmatprep.subr.bf16.mxu0 0
        %1122 = vmatpush1.bf16.msra.mxu0 %v1087
        %1123 = vmatprep.subr.bf16.mxu0 0
        %1124 = vmatpush1.bf16.msra.mxu0 %v1086
        %1125 = vmatprep.subr.bf16.mxu0 0
        %1126 = vmatpush2.bf16.msra.mxu0 %v1101
        %1127 = vmatprep.subr.bf16.mxu0 0
        %1128 = vmatpush2.bf16.msra.mxu0 %v1100
        %1129 = vmatprep.subr.bf16.mxu0 0
        %1130 = vmatpush2.bf16.msra.mxu0 %v1099
        %1131 = vmatprep.subr.bf16.mxu0 0
        %1132 = vmatpush2.bf16.msra.mxu0 %v1098
        %1133 = vmatprep.subr.bf16.mxu0 0
        %1134 = vmatpush2.bf16.msra.mxu0 %v1097
        %1135 = vmatprep.subr.bf16.mxu0 0
        %1136 = vmatpush2.bf16.msra.mxu0 %v1096
        %1137 = vmatprep.subr.bf16.mxu0 0
        %1138 = vmatpush2.bf16.msra.mxu0 %v1095
        %1139 = vmatprep.subr.bf16.mxu0 0
        %1140 = vmatpush2.bf16.msra.mxu0 %v1094
        %1141 = vmatprep.mubr.bf16.mxu0 %v823
        %1142 = vmatmul.mubr.bf16.gmra.mxu0 %v822
        %v1143 = vpop.f32.mrf.mxu0
        %v1144 = vadd.f32 %v1107, %v1143
        %v1145 = vpop.f32.mrf.mxu0
        %v1146 = vpop.f32.mrf.mxu0
        %v1147 = vadd.f32 %v1107, %v1146
        %v1148 = vpop.f32.mrf.mxu0
        %1149 = vmatprep.mubr.bf16.mxu0 %v825
        %1150 = vmatmul.mubr.bf16.gmra.mxu0 %v824
        %v1151 = vpop.f32.mrf.mxu0
        %v1152 = vadd.f32 %v1107, %v1151
        %v1153 = vpop.f32.mrf.mxu0
        %v1154 = vpop.f32.mrf.mxu0
        %v1155 = vadd.f32 %v1107, %v1154
        %v1156 = vpop.f32.mrf.mxu0
        %1157 = vmatprep.mubr.bf16.mxu0 %v827
        %1158 = vmatmul.mubr.bf16.gmra.mxu0 %v826
        %v1159 = vpop.f32.mrf.mxu0
        %v1160 = vadd.f32 %v1107, %v1159
        %v1161 = vpop.f32.mrf.mxu0
        %v1162 = vpop.f32.mrf.mxu0
        %v1163 = vadd.f32 %v1107, %v1162
        %v1164 = vpop.f32.mrf.mxu0
        %1165 = vmatprep.mubr.bf16.mxu0 %v829
        %1166 = vmatmul.mubr.bf16.gmra.mxu0 %v828
        %v1167 = vpop.f32.mrf.mxu0
        %v1168 = vadd.f32 %v1107, %v1167
        %v1169 = vpop.f32.mrf.mxu0
        %v1170 = vpop.f32.mrf.mxu0
        %v1171 = vadd.f32 %v1107, %v1170
        %v1172 = vpop.f32.mrf.mxu0
        %1173 = vmatprep.mubr.bf16.mxu0 %v831
        %1174 = vmatmul.mubr.bf16.gmra.mxu0 %v830
        %v1175 = vpop.f32.mrf.mxu0
        %v1176 = vadd.f32 %v1107, %v1175
        %v1177 = vpop.f32.mrf.mxu0
        %v1178 = vpop.f32.mrf.mxu0
        %v1179 = vadd.f32 %v1107, %v1178
        %v1180 = vpop.f32.mrf.mxu0
        %1181 = vmatprep.mubr.bf16.mxu0 %v833
        %1182 = vmatmul.mubr.bf16.gmra.mxu0 %v832
        %v1183 = vpop.f32.mrf.mxu0
        %v1184 = vadd.f32 %v1107, %v1183
        %v1185 = vpop.f32.mrf.mxu0
        %v1186 = vpop.f32.mrf.mxu0
        %v1187 = vadd.f32 %v1107, %v1186
        %v1188 = vpop.f32.mrf.mxu0
        %1189 = vmatprep.mubr.bf16.mxu0 %v835
        %1190 = vmatmul.mubr.bf16.gmra.mxu0 %v834
        %v1191 = vpop.f32.mrf.mxu0
        %v1192 = vadd.f32 %v1107, %v1191
        %v1193 = vpop.f32.mrf.mxu0
        %v1194 = vpop.f32.mrf.mxu0
        %v1195 = vadd.f32 %v1107, %v1194
        %v1196 = vpop.f32.mrf.mxu0
        %1197 = vmatprep.mubr.bf16.mxu0 %v837
        %1198 = vmatmul.mubr.bf16.gmra.mxu0 %v836
        %v1199 = vpop.f32.mrf.mxu0
        %v1200 = vadd.f32 %v1107, %v1199
        %v1201 = vpop.f32.mrf.mxu0
        %v1202 = vpop.f32.mrf.mxu0
        %v1203 = vadd.f32 %v1107, %v1202
        %v1204 = vpop.f32.mrf.mxu0
        %1205 = vdwg.mxu0
        %v1206 = vld [vmem:[%s606] sm:$0xff]
        %v1207 = vld [vmem:[%s606 + $0x8] sm:$0xff]
        %v1208 = vld [vmem:[%s606 + $0x10] sm:$0xff]
        %v1209 = vld [vmem:[%s606 + $0x18] sm:$0xff]
        %v1210 = vld [vmem:[%s606 + $0x20] sm:$0xff]
        %v1211 = vld [vmem:[%s606 + $0x28] sm:$0xff]
        %v1212 = vld [vmem:[%s606 + $0x30] sm:$0xff]
        %v1213 = vld [vmem:[%s606 + $0x38] sm:$0xff]
        %v1214 = vld [vmem:[%s606 + $0x40] sm:$0xff]
        %v1215 = vld [vmem:[%s606 + $0x48] sm:$0xff]
        %v1216 = vld [vmem:[%s606 + $0x50] sm:$0xff]
        %v1217 = vld [vmem:[%s606 + $0x58] sm:$0xff]
        %v1218 = vld [vmem:[%s606 + $0x60] sm:$0xff]
        %v1219 = vld [vmem:[%s606 + $0x68] sm:$0xff]
        %v1220 = vld [vmem:[%s606 + $0x70] sm:$0xff]
        %v1221 = vld [vmem:[%s606 + $0x78] sm:$0xff]
        %v1222 = vld [vmem:[%s606 + $0x80] sm:$0xff]
        %v1223 = vld [vmem:[%s606 + $0x88] sm:$0xff]
        %v1224 = vld [vmem:[%s606 + $0x90] sm:$0xff]
        %v1225 = vld [vmem:[%s606 + $0x98] sm:$0xff]
        %v1226 = vld [vmem:[%s606 + $0xa0] sm:$0xff]
        %v1227 = vld [vmem:[%s606 + $0xa8] sm:$0xff]
        %v1228 = vld [vmem:[%s606 + $0xb0] sm:$0xff]
        %v1229 = vld [vmem:[%s606 + $0xb8] sm:$0xff]
        %v1230 = vld [vmem:[%s606 + $0xc0] sm:$0xff]
        %v1231 = vld [vmem:[%s606 + $0xc8] sm:$0xff]
        %v1232 = vld [vmem:[%s606 + $0xd0] sm:$0xff]
        %v1233 = vld [vmem:[%s606 + $0xd8] sm:$0xff]
        %v1234 = vld [vmem:[%s606 + $0xe0] sm:$0xff]
        %v1235 = vld [vmem:[%s606 + $0xe8] sm:$0xff]
        %v1236 = vld [vmem:[%s606 + $0xf0] sm:$0xff]
        %v1237 = vld [vmem:[%s606 + $0xf8] sm:$0xff]
        %v1238 = vpack.c.bf16 %v1207, %v1206
        %v1239 = vpack.c.bf16 %v1209, %v1208
        %v1240 = vpack.c.bf16 %v1211, %v1210
        %v1241 = vpack.c.bf16 %v1213, %v1212
        %v1242 = vpack.c.bf16 %v1215, %v1214
        %v1243 = vpack.c.bf16 %v1217, %v1216
        %v1244 = vpack.c.bf16 %v1219, %v1218
        %v1245 = vpack.c.bf16 %v1221, %v1220
        %v1246 = vpack.c.bf16 %v1223, %v1222
        %v1247 = vpack.c.bf16 %v1225, %v1224
        %v1248 = vpack.c.bf16 %v1227, %v1226
        %v1249 = vpack.c.bf16 %v1229, %v1228
        %v1250 = vpack.c.bf16 %v1231, %v1230
        %v1251 = vpack.c.bf16 %v1233, %v1232
        %v1252 = vpack.c.bf16 %v1235, %v1234
        %v1253 = vpack.c.bf16 %v1237, %v1236
        %v1254 = vld [vmem:[%s702] sm:$0x1]
        %v1256 = vlaneseq
        %v1257 = vshrl.u32 %v1256, 7
        %v1258 = vsub.s32 0, %v1257
        %v1259 = vrot.slane %v1254, %v1258
        %1261 = vmatprep.subr.bf16.mxu0 0
        %1262 = vmatpush1.bf16.msra.mxu0 %v1245
        %1263 = vmatprep.subr.bf16.mxu0 0
        %1264 = vmatpush1.bf16.msra.mxu0 %v1244
        %1265 = vmatprep.subr.bf16.mxu0 0
        %1266 = vmatpush1.bf16.msra.mxu0 %v1243
        %1267 = vmatprep.subr.bf16.mxu0 0
        %1268 = vmatpush1.bf16.msra.mxu0 %v1242
        %1269 = vmatprep.subr.bf16.mxu0 0
        %1270 = vmatpush1.bf16.msra.mxu0 %v1241
        %1271 = vmatprep.subr.bf16.mxu0 0
        %1272 = vmatpush1.bf16.msra.mxu0 %v1240
        %1273 = vmatprep.subr.bf16.mxu0 0
        %1274 = vmatpush1.bf16.msra.mxu0 %v1239
        %1275 = vmatprep.subr.bf16.mxu0 0
        %1276 = vmatpush1.bf16.msra.mxu0 %v1238
        %1277 = vmatprep.subr.bf16.mxu0 0
        %1278 = vmatpush2.bf16.msra.mxu0 %v1253
        %1279 = vmatprep.subr.bf16.mxu0 0
        %1280 = vmatpush2.bf16.msra.mxu0 %v1252
        %1281 = vmatprep.subr.bf16.mxu0 0
        %1282 = vmatpush2.bf16.msra.mxu0 %v1251
        %1283 = vmatprep.subr.bf16.mxu0 0
        %1284 = vmatpush2.bf16.msra.mxu0 %v1250
        %1285 = vmatprep.subr.bf16.mxu0 0
        %1286 = vmatpush2.bf16.msra.mxu0 %v1249
        %1287 = vmatprep.subr.bf16.mxu0 0
        %1288 = vmatpush2.bf16.msra.mxu0 %v1248
        %1289 = vmatprep.subr.bf16.mxu0 0
        %1290 = vmatpush2.bf16.msra.mxu0 %v1247
        %1291 = vmatprep.subr.bf16.mxu0 0
        %1292 = vmatpush2.bf16.msra.mxu0 %v1246
        %1293 = vmatprep.mubr.bf16.mxu0 %v871
        %1294 = vmatmul.mubr.bf16.gmra.mxu0 %v870
        %v1295 = vpop.f32.mrf.mxu0
        %v1296 = vadd.f32 %v1259, %v1295
        %v1297 = vpop.f32.mrf.mxu0
        %v1298 = vpop.f32.mrf.mxu0
        %v1299 = vadd.f32 %v1259, %v1298
        %v1300 = vpop.f32.mrf.mxu0
        %1301 = vmatprep.mubr.bf16.mxu0 %v873
        %1302 = vmatmul.mubr.bf16.gmra.mxu0 %v872
        %v1303 = vpop.f32.mrf.mxu0
        %v1304 = vadd.f32 %v1259, %v1303
        %v1305 = vpop.f32.mrf.mxu0
        %v1306 = vpop.f32.mrf.mxu0
        %v1307 = vadd.f32 %v1259, %v1306
        %v1308 = vpop.f32.mrf.mxu0
        %1309 = vmatprep.mubr.bf16.mxu0 %v875
        %1310 = vmatmul.mubr.bf16.gmra.mxu0 %v874
        %v1311 = vpop.f32.mrf.mxu0
        %v1312 = vadd.f32 %v1259, %v1311
        %v1313 = vpop.f32.mrf.mxu0
        %v1314 = vpop.f32.mrf.mxu0
        %v1315 = vadd.f32 %v1259, %v1314
        %v1316 = vpop.f32.mrf.mxu0
        %1317 = vmatprep.mubr.bf16.mxu0 %v877
        %1318 = vmatmul.mubr.bf16.gmra.mxu0 %v876
        %v1319 = vpop.f32.mrf.mxu0
        %v1320 = vadd.f32 %v1259, %v1319
        %v1321 = vpop.f32.mrf.mxu0
        %v1322 = vpop.f32.mrf.mxu0
        %v1323 = vadd.f32 %v1259, %v1322
        %v1324 = vpop.f32.mrf.mxu0
        %1325 = vmatprep.mubr.bf16.mxu0 %v879
        %1326 = vmatmul.mubr.bf16.gmra.mxu0 %v878
        %v1327 = vpop.f32.mrf.mxu0
        %v1328 = vadd.f32 %v1259, %v1327
        %v1329 = vpop.f32.mrf.mxu0
        %v1330 = vpop.f32.mrf.mxu0
        %v1331 = vadd.f32 %v1259, %v1330
        %v1332 = vpop.f32.mrf.mxu0
        %1333 = vmatprep.mubr.bf16.mxu0 %v881
        %1334 = vmatmul.mubr.bf16.gmra.mxu0 %v880
        %v1335 = vpop.f32.mrf.mxu0
        %v1336 = vadd.f32 %v1259, %v1335
        %v1337 = vpop.f32.mrf.mxu0
        %v1338 = vpop.f32.mrf.mxu0
        %v1339 = vadd.f32 %v1259, %v1338
        %v1340 = vpop.f32.mrf.mxu0
        %1341 = vmatprep.mubr.bf16.mxu0 %v883
        %1342 = vmatmul.mubr.bf16.gmra.mxu0 %v882
        %v1343 = vpop.f32.mrf.mxu0
        %v1344 = vadd.f32 %v1259, %v1343
        %v1345 = vpop.f32.mrf.mxu0
        %v1346 = vpop.f32.mrf.mxu0
        %v1347 = vadd.f32 %v1259, %v1346
        %v1348 = vpop.f32.mrf.mxu0
        %1349 = vmatprep.mubr.bf16.mxu0 %v885
        %1350 = vmatmul.mubr.bf16.gmra.mxu0 %v884
        %v1351 = vpop.f32.mrf.mxu0
        %v1352 = vadd.f32 %v1259, %v1351
        %v1353 = vpop.f32.mrf.mxu0
        %v1354 = vpop.f32.mrf.mxu0
        %v1355 = vadd.f32 %v1259, %v1354
        %v1356 = vpop.f32.mrf.mxu0
        %1357 = vdwg.mxu0
        %v1358 = vpack.c.bf16 %v1039, %v1038
        %v1359 = vpack.c.bf16 %v1041, %v1040
        %v1360 = vpack.c.bf16 %v1043, %v1042
        %v1361 = vpack.c.bf16 %v1045, %v1044
        %v1362 = vpack.c.bf16 %v1047, %v1046
        %v1363 = vpack.c.bf16 %v1049, %v1048
        %v1364 = vpack.c.bf16 %v1051, %v1050
        %v1365 = vpack.c.bf16 %v1053, %v1052
        %v1366 = vpack.c.bf16 %v1147, %v1144
        %v1367 = vpack.c.bf16 %v1155, %v1152
        %v1368 = vpack.c.bf16 %v1163, %v1160
        %v1369 = vpack.c.bf16 %v1171, %v1168
        %v1370 = vpack.c.bf16 %v1179, %v1176
        %v1371 = vpack.c.bf16 %v1187, %v1184
        %v1372 = vpack.c.bf16 %v1195, %v1192
        %v1373 = vpack.c.bf16 %v1203, %v1200
        %1374 = vmatprep.subr.bf16.mxu0 0
        %1375 = vmatpush1.bf16.xpose.msra.mxu0 %v1373
        %1376 = vmatprep.subr.bf16.mxu0 0
        %1377 = vmatpush1.bf16.xpose.msra.mxu0 %v1372
        %1378 = vmatprep.subr.bf16.mxu0 0
        %1379 = vmatpush1.bf16.xpose.msra.mxu0 %v1371
        %1380 = vmatprep.subr.bf16.mxu0 0
        %1381 = vmatpush1.bf16.xpose.msra.mxu0 %v1370
        %1382 = vmatprep.subr.bf16.mxu0 0
        %1383 = vmatpush1.bf16.xpose.msra.mxu0 %v1369
        %1384 = vmatprep.subr.bf16.mxu0 0
        %1385 = vmatpush1.bf16.xpose.msra.mxu0 %v1368
        %1386 = vmatprep.subr.bf16.mxu0 0
        %1387 = vmatpush1.bf16.xpose.msra.mxu0 %v1367
        %1388 = vmatprep.subr.bf16.mxu0 0
        %1389 = vmatpush1.bf16.xpose.msra.mxu0 %v1366
        %1390 = vmatprep.subr.bf16.mxu0 0
        %1391 = vmatpush2.bf16.xpose.msra.mxu0 0
        %1392 = vmatprep.subr.bf16.mxu0 0
        %1393 = vmatpush2.bf16.xpose.msra.mxu0 0
        %1394 = vmatprep.subr.bf16.mxu0 0
        %1395 = vmatpush2.bf16.xpose.msra.mxu0 0
        %1396 = vmatprep.subr.bf16.mxu0 0
        %1397 = vmatpush2.bf16.xpose.msra.mxu0 0
        %1398 = vmatprep.subr.bf16.mxu0 0
        %1399 = vmatpush2.bf16.xpose.msra.mxu0 0
        %1400 = vmatprep.subr.bf16.mxu0 0
        %1401 = vmatpush2.bf16.xpose.msra.mxu0 0
        %1402 = vmatprep.subr.bf16.mxu0 0
        %1403 = vmatpush2.bf16.xpose.msra.mxu0 0
        %1404 = vmatprep.subr.bf16.mxu0 0
        %1405 = vmatpush2.bf16.xpose.msra.mxu0 0
        %1406 = vmatprep.mubr.bf16.mxu0 0
        %1407 = vmatmul.mubr.bf16.gmra.mxu0 %v1358
        %v1408 = vpop.f32.mrf.mxu0
        %v1409 = vadd.f32 0.0, %v1408
        %v1410 = vpop.f32.mrf.mxu0
        %v1411 = vpop.f32.mrf.mxu0
        %v1412 = vadd.f32 0.0, %v1411
        %v1413 = vpop.f32.mrf.mxu0
        %1414 = vmatprep.mubr.bf16.mxu0 0
        %1415 = vmatmul.mubr.bf16.gmra.mxu0 %v1359
        %v1416 = vpop.f32.mrf.mxu0
        %v1417 = vadd.f32 0.0, %v1416
        %v1418 = vpop.f32.mrf.mxu0
        %v1419 = vpop.f32.mrf.mxu0
        %v1420 = vadd.f32 0.0, %v1419
        %v1421 = vpop.f32.mrf.mxu0
        %1422 = vmatprep.mubr.bf16.mxu0 0
        %1423 = vmatmul.mubr.bf16.gmra.mxu0 %v1360
        %v1424 = vpop.f32.mrf.mxu0
        %v1425 = vadd.f32 0.0, %v1424
        %v1426 = vpop.f32.mrf.mxu0
        %v1427 = vpop.f32.mrf.mxu0
        %v1428 = vadd.f32 0.0, %v1427
        %v1429 = vpop.f32.mrf.mxu0
        %1430 = vmatprep.mubr.bf16.mxu0 0
        %1431 = vmatmul.mubr.bf16.gmra.mxu0 %v1361
        %v1432 = vpop.f32.mrf.mxu0
        %v1433 = vadd.f32 0.0, %v1432
        %v1434 = vpop.f32.mrf.mxu0
        %v1435 = vpop.f32.mrf.mxu0
        %v1436 = vadd.f32 0.0, %v1435
        %v1437 = vpop.f32.mrf.mxu0
        %1438 = vmatprep.mubr.bf16.mxu0 0
        %1439 = vmatmul.mubr.bf16.gmra.mxu0 %v1362
        %v1440 = vpop.f32.mrf.mxu0
        %v1441 = vadd.f32 0.0, %v1440
        %v1442 = vpop.f32.mrf.mxu0
        %v1443 = vpop.f32.mrf.mxu0
        %v1444 = vadd.f32 0.0, %v1443
        %v1445 = vpop.f32.mrf.mxu0
        %1446 = vmatprep.mubr.bf16.mxu0 0
        %1447 = vmatmul.mubr.bf16.gmra.mxu0 %v1363
        %v1448 = vpop.f32.mrf.mxu0
        %v1449 = vadd.f32 0.0, %v1448
        %v1450 = vpop.f32.mrf.mxu0
        %v1451 = vpop.f32.mrf.mxu0
        %v1452 = vadd.f32 0.0, %v1451
        %v1453 = vpop.f32.mrf.mxu0
        %1454 = vmatprep.mubr.bf16.mxu0 0
        %1455 = vmatmul.mubr.bf16.gmra.mxu0 %v1364
        %v1456 = vpop.f32.mrf.mxu0
        %v1457 = vadd.f32 0.0, %v1456
        %v1458 = vpop.f32.mrf.mxu0
        %v1459 = vpop.f32.mrf.mxu0
        %v1460 = vadd.f32 0.0, %v1459
        %v1461 = vpop.f32.mrf.mxu0
        %1462 = vmatprep.mubr.bf16.mxu0 0
        %1463 = vmatmul.mubr.bf16.gmra.mxu0 %v1365
        %v1464 = vpop.f32.mrf.mxu0
        %v1465 = vadd.f32 0.0, %v1464
        %v1466 = vpop.f32.mrf.mxu0
        %v1467 = vpop.f32.mrf.mxu0
        %v1468 = vadd.f32 0.0, %v1467
        %v1469 = vpop.f32.mrf.mxu0
        %1470 = vdwg.mxu0
        %1471 = vmax.xlane.f32.xlu0 %v1409
        %v1472 = vpop.xlane.xlu0 %1471
        %1473 = vmax.xlane.f32.xlu0 %v1412
        %v1474 = vpop.xlane.xlu0 %1473
        %1475 = vmax.xlane.f32.xlu0 %v1417
        %v1476 = vpop.xlane.xlu0 %1475
        %1477 = vmax.xlane.f32.xlu0 %v1420
        %v1478 = vpop.xlane.xlu0 %1477
        %1479 = vmax.xlane.f32.xlu0 %v1425
        %v1480 = vpop.xlane.xlu0 %1479
        %1481 = vmax.xlane.f32.xlu0 %v1428
        %v1482 = vpop.xlane.xlu0 %1481
        %1483 = vmax.xlane.f32.xlu0 %v1433
        %v1484 = vpop.xlane.xlu0 %1483
        %1485 = vmax.xlane.f32.xlu0 %v1436
        %v1486 = vpop.xlane.xlu0 %1485
        %1487 = vmax.xlane.f32.xlu0 %v1441
        %v1488 = vpop.xlane.xlu0 %1487
        %1489 = vmax.xlane.f32.xlu0 %v1444
        %v1490 = vpop.xlane.xlu0 %1489
        %1491 = vmax.xlane.f32.xlu0 %v1449
        %v1492 = vpop.xlane.xlu0 %1491
        %1493 = vmax.xlane.f32.xlu0 %v1452
        %v1494 = vpop.xlane.xlu0 %1493
        %1495 = vmax.xlane.f32.xlu0 %v1457
        %v1496 = vpop.xlane.xlu0 %1495
        %1497 = vmax.xlane.f32.xlu0 %v1460
        %v1498 = vpop.xlane.xlu0 %1497
        %1499 = vmax.xlane.f32.xlu0 %v1465
        %v1500 = vpop.xlane.xlu0 %1499
        %1501 = vmax.xlane.f32.xlu0 %v1468
        %v1502 = vpop.xlane.xlu0 %1501
        %v1503 = vsub.f32 %v1409, %v1472
        %v1504 = vsub.f32 %v1412, %v1474
        %v1505 = vsub.f32 %v1417, %v1476
        %v1506 = vsub.f32 %v1420, %v1478
        %v1507 = vsub.f32 %v1425, %v1480
        %v1508 = vsub.f32 %v1428, %v1482
        %v1509 = vsub.f32 %v1433, %v1484
        %v1510 = vsub.f32 %v1436, %v1486
        %v1511 = vsub.f32 %v1441, %v1488
        %v1512 = vsub.f32 %v1444, %v1490
        %v1513 = vsub.f32 %v1449, %v1492
        %v1514 = vsub.f32 %v1452, %v1494
        %v1515 = vsub.f32 %v1457, %v1496
        %v1516 = vsub.f32 %v1460, %v1498
        %v1517 = vsub.f32 %v1465, %v1500
        %v1518 = vsub.f32 %v1468, %v1502
        %v1519 = vmul.f32 %v1503, 1.442695
        %v1520 = vpow.pop %v1519
        %v1521 = vmul.f32 %v1504, 1.442695
        %v1522 = vpow.pop %v1521
        %v1523 = vmul.f32 %v1505, 1.442695
        %v1524 = vpow.pop %v1523
        %v1525 = vmul.f32 %v1506, 1.442695
        %v1526 = vpow.pop %v1525
        %v1527 = vmul.f32 %v1507, 1.442695
        %v1528 = vpow.pop %v1527
        %v1529 = vmul.f32 %v1508, 1.442695
        %v1530 = vpow.pop %v1529
        %v1531 = vmul.f32 %v1509, 1.442695
        %v1532 = vpow.pop %v1531
        %v1533 = vmul.f32 %v1510, 1.442695
        %v1534 = vpow.pop %v1533
        %v1535 = vmul.f32 %v1511, 1.442695
        %v1536 = vpow.pop %v1535
        %v1537 = vmul.f32 %v1512, 1.442695
        %v1538 = vpow.pop %v1537
        %v1539 = vmul.f32 %v1513, 1.442695
        %v1540 = vpow.pop %v1539
        %v1541 = vmul.f32 %v1514, 1.442695
        %v1542 = vpow.pop %v1541
        %v1543 = vmul.f32 %v1515, 1.442695
        %v1544 = vpow.pop %v1543
        %v1545 = vmul.f32 %v1516, 1.442695
        %v1546 = vpow.pop %v1545
        %v1547 = vmul.f32 %v1517, 1.442695
        %v1548 = vpow.pop %v1547
        %v1549 = vmul.f32 %v1518, 1.442695
        %v1550 = vpow.pop %v1549
        %1551 = vadd.xlane.f32.xlu0 %v1520
        %v1552 = vpop.xlane.xlu0 %1551
        %1553 = vadd.xlane.f32.xlu0 %v1522
        %v1554 = vpop.xlane.xlu0 %1553
        %1555 = vadd.xlane.f32.xlu0 %v1524
        %v1556 = vpop.xlane.xlu0 %1555
        %1557 = vadd.xlane.f32.xlu0 %v1526
        %v1558 = vpop.xlane.xlu0 %1557
        %1559 = vadd.xlane.f32.xlu0 %v1528
        %v1560 = vpop.xlane.xlu0 %1559
        %1561 = vadd.xlane.f32.xlu0 %v1530
        %v1562 = vpop.xlane.xlu0 %1561
        %1563 = vadd.xlane.f32.xlu0 %v1532
        %v1564 = vpop.xlane.xlu0 %1563
        %1565 = vadd.xlane.f32.xlu0 %v1534
        %v1566 = vpop.xlane.xlu0 %1565
        %1567 = vadd.xlane.f32.xlu0 %v1536
        %v1568 = vpop.xlane.xlu0 %1567
        %1569 = vadd.xlane.f32.xlu0 %v1538
        %v1570 = vpop.xlane.xlu0 %1569
        %1571 = vadd.xlane.f32.xlu0 %v1540
        %v1572 = vpop.xlane.xlu0 %1571
        %1573 = vadd.xlane.f32.xlu0 %v1542
        %v1574 = vpop.xlane.xlu0 %1573
        %1575 = vadd.xlane.f32.xlu0 %v1544
        %v1576 = vpop.xlane.xlu0 %1575
        %1577 = vadd.xlane.f32.xlu0 %v1546
        %v1578 = vpop.xlane.xlu0 %1577
        %1579 = vadd.xlane.f32.xlu0 %v1548
        %v1580 = vpop.xlane.xlu0 %1579
        %1581 = vadd.xlane.f32.xlu0 %v1550
        %v1582 = vpop.xlane.xlu0 %1581
        %v1583 = vrcp.pop %v1552
        %v1584 = vrcp.pop %v1554
        %v1585 = vrcp.pop %v1556
        %v1586 = vrcp.pop %v1558
        %v1587 = vrcp.pop %v1560
        %v1588 = vrcp.pop %v1562
        %v1589 = vrcp.pop %v1564
        %v1590 = vrcp.pop %v1566
        %v1591 = vrcp.pop %v1568
        %v1592 = vrcp.pop %v1570
        %v1593 = vrcp.pop %v1572
        %v1594 = vrcp.pop %v1574
        %v1595 = vrcp.pop %v1576
        %v1596 = vrcp.pop %v1578
        %v1597 = vrcp.pop %v1580
        %v1598 = vrcp.pop %v1582
        %v1599 = vmul.f32 %v1520, %v1583
        %v1600 = vmul.f32 %v1522, %v1584
        %v1601 = vmul.f32 %v1524, %v1585
        %v1602 = vmul.f32 %v1526, %v1586
        %v1603 = vmul.f32 %v1528, %v1587
        %v1604 = vmul.f32 %v1530, %v1588
        %v1605 = vmul.f32 %v1532, %v1589
        %v1606 = vmul.f32 %v1534, %v1590
        %v1607 = vmul.f32 %v1536, %v1591
        %v1608 = vmul.f32 %v1538, %v1592
        %v1609 = vmul.f32 %v1540, %v1593
        %v1610 = vmul.f32 %v1542, %v1594
        %v1611 = vmul.f32 %v1544, %v1595
        %v1612 = vmul.f32 %v1546, %v1596
        %v1613 = vmul.f32 %v1548, %v1597
        %v1614 = vmul.f32 %v1550, %v1598
        %v1615 = vpack.c.bf16 %v1600, %v1599
        %v1616 = vpack.c.bf16 %v1602, %v1601
        %v1617 = vpack.c.bf16 %v1604, %v1603
        %v1618 = vpack.c.bf16 %v1606, %v1605
        %v1619 = vpack.c.bf16 %v1608, %v1607
        %v1620 = vpack.c.bf16 %v1610, %v1609
        %v1621 = vpack.c.bf16 %v1612, %v1611
        %v1622 = vpack.c.bf16 %v1614, %v1613
        %v1623 = vpack.c.bf16 %v1299, %v1296
        %v1624 = vpack.c.bf16 %v1307, %v1304
        %v1625 = vpack.c.bf16 %v1315, %v1312
        %v1626 = vpack.c.bf16 %v1323, %v1320
        %v1627 = vpack.c.bf16 %v1331, %v1328
        %v1628 = vpack.c.bf16 %v1339, %v1336
        %v1629 = vpack.c.bf16 %v1347, %v1344
        %v1630 = vpack.c.bf16 %v1355, %v1352
        %1631 = vmatprep.subr.bf16.mxu0 0
        %1632 = vmatpush1.bf16.msra.mxu0 %v1630
        %1633 = vmatprep.subr.bf16.mxu0 0
        %1634 = vmatpush1.bf16.msra.mxu0 %v1629
        %1635 = vmatprep.subr.bf16.mxu0 0
        %1636 = vmatpush1.bf16.msra.mxu0 %v1628
        %1637 = vmatprep.subr.bf16.mxu0 0
        %1638 = vmatpush1.bf16.msra.mxu0 %v1627
        %1639 = vmatprep.subr.bf16.mxu0 0
        %1640 = vmatpush1.bf16.msra.mxu0 %v1626
        %1641 = vmatprep.subr.bf16.mxu0 0
        %1642 = vmatpush1.bf16.msra.mxu0 %v1625
        %1643 = vmatprep.subr.bf16.mxu0 0
        %1644 = vmatpush1.bf16.msra.mxu0 %v1624
        %1645 = vmatprep.subr.bf16.mxu0 0
        %1646 = vmatpush1.bf16.msra.mxu0 %v1623
        %1647 = vmatprep.subr.bf16.mxu0 0
        %1648 = vmatpush2.bf16.msra.mxu0 0
        %1649 = vmatprep.subr.bf16.mxu0 0
        %1650 = vmatpush2.bf16.msra.mxu0 0
        %1651 = vmatprep.subr.bf16.mxu0 0
        %1652 = vmatpush2.bf16.msra.mxu0 0
        %1653 = vmatprep.subr.bf16.mxu0 0
        %1654 = vmatpush2.bf16.msra.mxu0 0
        %1655 = vmatprep.subr.bf16.mxu0 0
        %1656 = vmatpush2.bf16.msra.mxu0 0
        %1657 = vmatprep.subr.bf16.mxu0 0
        %1658 = vmatpush2.bf16.msra.mxu0 0
        %1659 = vmatprep.subr.bf16.mxu0 0
        %1660 = vmatpush2.bf16.msra.mxu0 0
        %1661 = vmatprep.subr.bf16.mxu0 0
        %1662 = vmatpush2.bf16.msra.mxu0 0
        %1663 = vmatprep.mubr.bf16.mxu0 0
        %1664 = vmatmul.mubr.bf16.gmra.mxu0 %v1615
        %v1665 = vpop.f32.mrf.mxu0
        %v1666 = vadd.f32 0.0, %v1665
        %v1667 = vpop.f32.mrf.mxu0
        %v1668 = vpop.f32.mrf.mxu0
        %v1669 = vadd.f32 0.0, %v1668
        %v1670 = vpop.f32.mrf.mxu0
        %1671 = vmatprep.mubr.bf16.mxu0 0
        %1672 = vmatmul.mubr.bf16.gmra.mxu0 %v1616
        %v1673 = vpop.f32.mrf.mxu0
        %v1674 = vadd.f32 0.0, %v1673
        %v1675 = vpop.f32.mrf.mxu0
        %v1676 = vpop.f32.mrf.mxu0
        %v1677 = vadd.f32 0.0, %v1676
        %v1678 = vpop.f32.mrf.mxu0
        %1679 = vmatprep.mubr.bf16.mxu0 0
        %1680 = vmatmul.mubr.bf16.gmra.mxu0 %v1617
        %v1681 = vpop.f32.mrf.mxu0
        %v1682 = vadd.f32 0.0, %v1681
        %v1683 = vpop.f32.mrf.mxu0
        %v1684 = vpop.f32.mrf.mxu0
        %v1685 = vadd.f32 0.0, %v1684
        %v1686 = vpop.f32.mrf.mxu0
        %1687 = vmatprep.mubr.bf16.mxu0 0
        %1688 = vmatmul.mubr.bf16.gmra.mxu0 %v1618
        %v1689 = vpop.f32.mrf.mxu0
        %v1690 = vadd.f32 0.0, %v1689
        %v1691 = vpop.f32.mrf.mxu0
        %v1692 = vpop.f32.mrf.mxu0
        %v1693 = vadd.f32 0.0, %v1692
        %v1694 = vpop.f32.mrf.mxu0
        %1695 = vmatprep.mubr.bf16.mxu0 0
        %1696 = vmatmul.mubr.bf16.gmra.mxu0 %v1619
        %v1697 = vpop.f32.mrf.mxu0
        %v1698 = vadd.f32 0.0, %v1697
        %v1699 = vpop.f32.mrf.mxu0
        %v1700 = vpop.f32.mrf.mxu0
        %v1701 = vadd.f32 0.0, %v1700
        %v1702 = vpop.f32.mrf.mxu0
        %1703 = vmatprep.mubr.bf16.mxu0 0
        %1704 = vmatmul.mubr.bf16.gmra.mxu0 %v1620
        %v1705 = vpop.f32.mrf.mxu0
        %v1706 = vadd.f32 0.0, %v1705
        %v1707 = vpop.f32.mrf.mxu0
        %v1708 = vpop.f32.mrf.mxu0
        %v1709 = vadd.f32 0.0, %v1708
        %v1710 = vpop.f32.mrf.mxu0
        %1711 = vmatprep.mubr.bf16.mxu0 0
        %1712 = vmatmul.mubr.bf16.gmra.mxu0 %v1621
        %v1713 = vpop.f32.mrf.mxu0
        %v1714 = vadd.f32 0.0, %v1713
        %v1715 = vpop.f32.mrf.mxu0
        %v1716 = vpop.f32.mrf.mxu0
        %v1717 = vadd.f32 0.0, %v1716
        %v1718 = vpop.f32.mrf.mxu0
        %1719 = vmatprep.mubr.bf16.mxu0 0
        %1720 = vmatmul.mubr.bf16.gmra.mxu0 %v1622
        %v1721 = vpop.f32.mrf.mxu0
        %v1722 = vadd.f32 0.0, %v1721
        %v1723 = vpop.f32.mrf.mxu0
        %v1724 = vpop.f32.mrf.mxu0
        %v1725 = vadd.f32 0.0, %v1724
        %v1726 = vpop.f32.mrf.mxu0
        %1727 = vdwg.mxu0
        %v1728 = vld [vmem:[#allocation2] sm:$0xff]
        %v1729 = vld [vmem:[#allocation2 + $0x8] sm:$0xff]
        %v1730 = vld [vmem:[#allocation2 + $0x10] sm:$0xff]
        %v1731 = vld [vmem:[#allocation2 + $0x18] sm:$0xff]
        %v1732 = vld [vmem:[#allocation2 + $0x20] sm:$0xff]
        %v1733 = vld [vmem:[#allocation2 + $0x28] sm:$0xff]
        %v1734 = vld [vmem:[#allocation2 + $0x30] sm:$0xff]
        %v1735 = vld [vmem:[#allocation2 + $0x38] sm:$0xff]
        %v1736 = vld [vmem:[#allocation2 + $0x40] sm:$0xff]
        %v1737 = vld [vmem:[#allocation2 + $0x48] sm:$0xff]
        %v1738 = vld [vmem:[#allocation2 + $0x50] sm:$0xff]
        %v1739 = vld [vmem:[#allocation2 + $0x58] sm:$0xff]
        %v1740 = vld [vmem:[#allocation2 + $0x60] sm:$0xff]
        %v1741 = vld [vmem:[#allocation2 + $0x68] sm:$0xff]
        %v1742 = vld [vmem:[#allocation2 + $0x70] sm:$0xff]
        %v1743 = vld [vmem:[#allocation2 + $0x78] sm:$0xff]
        %v1744 = vld [vmem:[#allocation2 + $0x80] sm:$0xff]
        %v1745 = vld [vmem:[#allocation2 + $0x88] sm:$0xff]
        %v1746 = vld [vmem:[#allocation2 + $0x90] sm:$0xff]
        %v1747 = vld [vmem:[#allocation2 + $0x98] sm:$0xff]
        %v1748 = vld [vmem:[#allocation2 + $0xa0] sm:$0xff]
        %v1749 = vld [vmem:[#allocation2 + $0xa8] sm:$0xff]
        %v1750 = vld [vmem:[#allocation2 + $0xb0] sm:$0xff]
        %v1751 = vld [vmem:[#allocation2 + $0xb8] sm:$0xff]
        %v1752 = vld [vmem:[#allocation2 + $0xc0] sm:$0xff]
        %v1753 = vld [vmem:[#allocation2 + $0xc8] sm:$0xff]
        %v1754 = vld [vmem:[#allocation2 + $0xd0] sm:$0xff]
        %v1755 = vld [vmem:[#allocation2 + $0xd8] sm:$0xff]
        %v1756 = vld [vmem:[#allocation2 + $0xe0] sm:$0xff]
        %v1757 = vld [vmem:[#allocation2 + $0xe8] sm:$0xff]
        %v1758 = vld [vmem:[#allocation2 + $0xf0] sm:$0xff]
        %v1759 = vld [vmem:[#allocation2 + $0xf8] sm:$0xff]
        %v1760 = vpack.c.bf16 %v1669, %v1666
        %v1761 = vpack.c.bf16 %v1677, %v1674
        %v1762 = vpack.c.bf16 %v1685, %v1682
        %v1763 = vpack.c.bf16 %v1693, %v1690
        %v1764 = vpack.c.bf16 %v1701, %v1698
        %v1765 = vpack.c.bf16 %v1709, %v1706
        %v1766 = vpack.c.bf16 %v1717, %v1714
        %v1767 = vpack.c.bf16 %v1725, %v1722
        %v1768 = vld [vmem:[%s615] sm:$0xff]
        %v1769 = vld [vmem:[%s615 + $0x8] sm:$0xff]
        %v1770 = vld [vmem:[%s615 + $0x10] sm:$0xff]
        %v1771 = vld [vmem:[%s615 + $0x18] sm:$0xff]
        %v1772 = vld [vmem:[%s615 + $0x20] sm:$0xff]
        %v1773 = vld [vmem:[%s615 + $0x28] sm:$0xff]
        %v1774 = vld [vmem:[%s615 + $0x30] sm:$0xff]
        %v1775 = vld [vmem:[%s615 + $0x38] sm:$0xff]
        %v1776 = vld [vmem:[%s615 + $0x40] sm:$0xff]
        %v1777 = vld [vmem:[%s615 + $0x48] sm:$0xff]
        %v1778 = vld [vmem:[%s615 + $0x50] sm:$0xff]
        %v1779 = vld [vmem:[%s615 + $0x58] sm:$0xff]
        %v1780 = vld [vmem:[%s615 + $0x60] sm:$0xff]
        %v1781 = vld [vmem:[%s615 + $0x68] sm:$0xff]
        %v1782 = vld [vmem:[%s615 + $0x70] sm:$0xff]
        %v1783 = vld [vmem:[%s615 + $0x78] sm:$0xff]
        %v1784 = vld [vmem:[%s615 + $0x80] sm:$0xff]
        %v1785 = vld [vmem:[%s615 + $0x88] sm:$0xff]
        %v1786 = vld [vmem:[%s615 + $0x90] sm:$0xff]
        %v1787 = vld [vmem:[%s615 + $0x98] sm:$0xff]
        %v1788 = vld [vmem:[%s615 + $0xa0] sm:$0xff]
        %v1789 = vld [vmem:[%s615 + $0xa8] sm:$0xff]
        %v1790 = vld [vmem:[%s615 + $0xb0] sm:$0xff]
        %v1791 = vld [vmem:[%s615 + $0xb8] sm:$0xff]
        %v1792 = vld [vmem:[%s615 + $0xc0] sm:$0xff]
        %v1793 = vld [vmem:[%s615 + $0xc8] sm:$0xff]
        %v1794 = vld [vmem:[%s615 + $0xd0] sm:$0xff]
        %v1795 = vld [vmem:[%s615 + $0xd8] sm:$0xff]
        %v1796 = vld [vmem:[%s615 + $0xe0] sm:$0xff]
        %v1797 = vld [vmem:[%s615 + $0xe8] sm:$0xff]
        %v1798 = vld [vmem:[%s615 + $0xf0] sm:$0xff]
        %v1799 = vld [vmem:[%s615 + $0xf8] sm:$0xff]
        %v1800 = vpack.c.bf16 %v1770, %v1768
        %v1801 = vpack.c.bf16 %v1771, %v1769
        %v1802 = vpack.c.bf16 %v1774, %v1772
        %v1803 = vpack.c.bf16 %v1775, %v1773
        %v1804 = vpack.c.bf16 %v1778, %v1776
        %v1805 = vpack.c.bf16 %v1779, %v1777
        %v1806 = vpack.c.bf16 %v1782, %v1780
        %v1807 = vpack.c.bf16 %v1783, %v1781
        %v1808 = vpack.c.bf16 %v1786, %v1784
        %v1809 = vpack.c.bf16 %v1787, %v1785
        %v1810 = vpack.c.bf16 %v1790, %v1788
        %v1811 = vpack.c.bf16 %v1791, %v1789
        %v1812 = vpack.c.bf16 %v1794, %v1792
        %v1813 = vpack.c.bf16 %v1795, %v1793
        %v1814 = vpack.c.bf16 %v1798, %v1796
        %v1815 = vpack.c.bf16 %v1799, %v1797
        %1816 = vmatprep.subr.bf16.mxu0 %v1815
        %1817 = vmatpush1.bf16.msra.mxu0 %v1814
        %1818 = vmatprep.subr.bf16.mxu0 %v1813
        %1819 = vmatpush1.bf16.msra.mxu0 %v1812
        %1820 = vmatprep.subr.bf16.mxu0 %v1811
        %1821 = vmatpush1.bf16.msra.mxu0 %v1810
        %1822 = vmatprep.subr.bf16.mxu0 %v1809
        %1823 = vmatpush1.bf16.msra.mxu0 %v1808
        %1824 = vmatprep.subr.bf16.mxu0 %v1807
        %1825 = vmatpush1.bf16.msra.mxu0 %v1806
        %1826 = vmatprep.subr.bf16.mxu0 %v1805
        %1827 = vmatpush1.bf16.msra.mxu0 %v1804
        %1828 = vmatprep.subr.bf16.mxu0 %v1803
        %1829 = vmatpush1.bf16.msra.mxu0 %v1802
        %1830 = vmatprep.subr.bf16.mxu0 %v1801
        %1831 = vmatpush1.bf16.msra.mxu0 %v1800
        %1832 = vmatprep.subr.bf16.mxu0 0
        %1833 = vmatpush2.bf16.msra.mxu0 0
        %1834 = vmatprep.subr.bf16.mxu0 0
        %1835 = vmatpush2.bf16.msra.mxu0 0
        %1836 = vmatprep.subr.bf16.mxu0 0
        %1837 = vmatpush2.bf16.msra.mxu0 0
        %1838 = vmatprep.subr.bf16.mxu0 0
        %1839 = vmatpush2.bf16.msra.mxu0 0
        %1840 = vmatprep.subr.bf16.mxu0 0
        %1841 = vmatpush2.bf16.msra.mxu0 0
        %1842 = vmatprep.subr.bf16.mxu0 0
        %1843 = vmatpush2.bf16.msra.mxu0 0
        %1844 = vmatprep.subr.bf16.mxu0 0
        %1845 = vmatpush2.bf16.msra.mxu0 0
        %1846 = vmatprep.subr.bf16.mxu0 0
        %1847 = vmatpush2.bf16.msra.mxu0 0
        %1848 = vmatprep.mubr.bf16.mxu0 0
        %1849 = vmatmul.mubr.bf16.gmra.mxu0 %v1760
        %v1850 = vpop.f32.mrf.mxu0
        %v1851 = vadd.f32 0.0, %v1850
        %v1852 = vpop.f32.mrf.mxu0
        %v1853 = vadd.f32 0.0, %v1852
        %v1854 = vpop.f32.mrf.mxu0
        %v1855 = vadd.f32 0.0, %v1854
        %v1856 = vpop.f32.mrf.mxu0
        %v1857 = vadd.f32 0.0, %v1856
        %1858 = vmatprep.mubr.bf16.mxu0 0
        %1859 = vmatmul.mubr.bf16.gmra.mxu0 %v1761
        %v1860 = vpop.f32.mrf.mxu0
        %v1861 = vadd.f32 0.0, %v1860
        %v1862 = vpop.f32.mrf.mxu0
        %v1863 = vadd.f32 0.0, %v1862
        %v1864 = vpop.f32.mrf.mxu0
        %v1865 = vadd.f32 0.0, %v1864
        %v1866 = vpop.f32.mrf.mxu0
        %v1867 = vadd.f32 0.0, %v1866
        %1868 = vmatprep.mubr.bf16.mxu0 0
        %1869 = vmatmul.mubr.bf16.gmra.mxu0 %v1762
        %v1870 = vpop.f32.mrf.mxu0
        %v1871 = vadd.f32 0.0, %v1870
        %v1872 = vpop.f32.mrf.mxu0
        %v1873 = vadd.f32 0.0, %v1872
        %v1874 = vpop.f32.mrf.mxu0
        %v1875 = vadd.f32 0.0, %v1874
        %v1876 = vpop.f32.mrf.mxu0
        %v1877 = vadd.f32 0.0, %v1876
        %1878 = vmatprep.mubr.bf16.mxu0 0
        %1879 = vmatmul.mubr.bf16.gmra.mxu0 %v1763
        %v1880 = vpop.f32.mrf.mxu0
        %v1881 = vadd.f32 0.0, %v1880
        %v1882 = vpop.f32.mrf.mxu0
        %v1883 = vadd.f32 0.0, %v1882
        %v1884 = vpop.f32.mrf.mxu0
        %v1885 = vadd.f32 0.0, %v1884
        %v1886 = vpop.f32.mrf.mxu0
        %v1887 = vadd.f32 0.0, %v1886
        %1888 = vmatprep.mubr.bf16.mxu0 0
        %1889 = vmatmul.mubr.bf16.gmra.mxu0 %v1764
        %v1890 = vpop.f32.mrf.mxu0
        %v1891 = vadd.f32 0.0, %v1890
        %v1892 = vpop.f32.mrf.mxu0
        %v1893 = vadd.f32 0.0, %v1892
        %v1894 = vpop.f32.mrf.mxu0
        %v1895 = vadd.f32 0.0, %v1894
        %v1896 = vpop.f32.mrf.mxu0
        %v1897 = vadd.f32 0.0, %v1896
        %1898 = vmatprep.mubr.bf16.mxu0 0
        %1899 = vmatmul.mubr.bf16.gmra.mxu0 %v1765
        %v1900 = vpop.f32.mrf.mxu0
        %v1901 = vadd.f32 0.0, %v1900
        %v1902 = vpop.f32.mrf.mxu0
        %v1903 = vadd.f32 0.0, %v1902
        %v1904 = vpop.f32.mrf.mxu0
        %v1905 = vadd.f32 0.0, %v1904
        %v1906 = vpop.f32.mrf.mxu0
        %v1907 = vadd.f32 0.0, %v1906
        %1908 = vmatprep.mubr.bf16.mxu0 0
        %1909 = vmatmul.mubr.bf16.gmra.mxu0 %v1766
        %v1910 = vpop.f32.mrf.mxu0
        %v1911 = vadd.f32 0.0, %v1910
        %v1912 = vpop.f32.mrf.mxu0
        %v1913 = vadd.f32 0.0, %v1912
        %v1914 = vpop.f32.mrf.mxu0
        %v1915 = vadd.f32 0.0, %v1914
        %v1916 = vpop.f32.mrf.mxu0
        %v1917 = vadd.f32 0.0, %v1916
        %1918 = vmatprep.mubr.bf16.mxu0 0
        %1919 = vmatmul.mubr.bf16.gmra.mxu0 %v1767
        %v1920 = vpop.f32.mrf.mxu0
        %v1921 = vadd.f32 0.0, %v1920
        %v1922 = vpop.f32.mrf.mxu0
        %v1923 = vadd.f32 0.0, %v1922
        %v1924 = vpop.f32.mrf.mxu0
        %v1925 = vadd.f32 0.0, %v1924
        %v1926 = vpop.f32.mrf.mxu0
        %v1927 = vadd.f32 0.0, %v1926
        %1928 = vdwg.mxu0
        %v1929 = vadd.f32 %v1728, %v1851
        %v1930 = vadd.f32 %v1729, %v1853
        %v1931 = vadd.f32 %v1730, %v1855
        %v1932 = vadd.f32 %v1731, %v1857
        %v1933 = vadd.f32 %v1732, %v1861
        %v1934 = vadd.f32 %v1733, %v1863
        %v1935 = vadd.f32 %v1734, %v1865
        %v1936 = vadd.f32 %v1735, %v1867
        %v1937 = vadd.f32 %v1736, %v1871
        %v1938 = vadd.f32 %v1737, %v1873
        %v1939 = vadd.f32 %v1738, %v1875
        %v1940 = vadd.f32 %v1739, %v1877
        %v1941 = vadd.f32 %v1740, %v1881
        %v1942 = vadd.f32 %v1741, %v1883
        %v1943 = vadd.f32 %v1742, %v1885
        %v1944 = vadd.f32 %v1743, %v1887
        %v1945 = vadd.f32 %v1744, %v1891
        %v1946 = vadd.f32 %v1745, %v1893
        %v1947 = vadd.f32 %v1746, %v1895
        %v1948 = vadd.f32 %v1747, %v1897
        %v1949 = vadd.f32 %v1748, %v1901
        %v1950 = vadd.f32 %v1749, %v1903
        %v1951 = vadd.f32 %v1750, %v1905
        %v1952 = vadd.f32 %v1751, %v1907
        %v1953 = vadd.f32 %v1752, %v1911
        %v1954 = vadd.f32 %v1753, %v1913
        %v1955 = vadd.f32 %v1754, %v1915
        %v1956 = vadd.f32 %v1755, %v1917
        %v1957 = vadd.f32 %v1756, %v1921
        %v1958 = vadd.f32 %v1757, %v1923
        %v1959 = vadd.f32 %v1758, %v1925
        %v1960 = vadd.f32 %v1759, %v1927
        %1961 = vst [vmem:[#allocation2] sm:$0xff] %v1929
        %1962 = vst [vmem:[#allocation2 + $0x8] sm:$0xff] %v1930
        %1963 = vst [vmem:[#allocation2 + $0x10] sm:$0xff] %v1931
        %1964 = vst [vmem:[#allocation2 + $0x18] sm:$0xff] %v1932
        %1965 = vst [vmem:[#allocation2 + $0x20] sm:$0xff] %v1933
        %1966 = vst [vmem:[#allocation2 + $0x28] sm:$0xff] %v1934
        %1967 = vst [vmem:[#allocation2 + $0x30] sm:$0xff] %v1935
        %1968 = vst [vmem:[#allocation2 + $0x38] sm:$0xff] %v1936
        %1969 = vst [vmem:[#allocation2 + $0x40] sm:$0xff] %v1937
        %1970 = vst [vmem:[#allocation2 + $0x48] sm:$0xff] %v1938
        %1971 = vst [vmem:[#allocation2 + $0x50] sm:$0xff] %v1939
        %1972 = vst [vmem:[#allocation2 + $0x58] sm:$0xff] %v1940
        %1973 = vst [vmem:[#allocation2 + $0x60] sm:$0xff] %v1941
        %1974 = vst [vmem:[#allocation2 + $0x68] sm:$0xff] %v1942
        %1975 = vst [vmem:[#allocation2 + $0x70] sm:$0xff] %v1943
        %1976 = vst [vmem:[#allocation2 + $0x78] sm:$0xff] %v1944
        %1977 = vst [vmem:[#allocation2 + $0x80] sm:$0xff] %v1945
        %1978 = vst [vmem:[#allocation2 + $0x88] sm:$0xff] %v1946
        %1979 = vst [vmem:[#allocation2 + $0x90] sm:$0xff] %v1947
        %1980 = vst [vmem:[#allocation2 + $0x98] sm:$0xff] %v1948
        %1981 = vst [vmem:[#allocation2 + $0xa0] sm:$0xff] %v1949
        %1982 = vst [vmem:[#allocation2 + $0xa8] sm:$0xff] %v1950
        %1983 = vst [vmem:[#allocation2 + $0xb0] sm:$0xff] %v1951
        %1984 = vst [vmem:[#allocation2 + $0xb8] sm:$0xff] %v1952
        %1985 = vst [vmem:[#allocation2 + $0xc0] sm:$0xff] %v1953
        %1986 = vst [vmem:[#allocation2 + $0xc8] sm:$0xff] %v1954
        %1987 = vst [vmem:[#allocation2 + $0xd0] sm:$0xff] %v1955
        %1988 = vst [vmem:[#allocation2 + $0xd8] sm:$0xff] %v1956
        %1989 = vst [vmem:[#allocation2 + $0xe0] sm:$0xff] %v1957
        %1990 = vst [vmem:[#allocation2 + $0xe8] sm:$0xff] %v1958
        %1991 = vst [vmem:[#allocation2 + $0xf0] sm:$0xff] %v1959
        %1992 = vst [vmem:[#allocation2 + $0xf8] sm:$0xff] %v1960
        %p1993 = scmp.eq.s32.totalorder %s44, 1
        // Predicated region
        $region97: #{multi_head_attention.1} parent=63 // pred_check
          %p1994 = pneg %p1993
        $region98: #{multi_head_attention.1} parent=63 // pred_check_branch
          %1996 = sbr.rel (%p1994) target = $region100
        $region99: #{multi_head_attention.1} parent=63 // pred_region
          %v1997 = vld [vmem:[#allocation2] sm:$0xff]
          %v1998 = vld [vmem:[#allocation2 + $0x8] sm:$0xff]
          %v1999 = vld [vmem:[#allocation2 + $0x10] sm:$0xff]
          %v2000 = vld [vmem:[#allocation2 + $0x18] sm:$0xff]
          %v2001 = vld [vmem:[#allocation2 + $0x20] sm:$0xff]
          %v2002 = vld [vmem:[#allocation2 + $0x28] sm:$0xff]
          %v2003 = vld [vmem:[#allocation2 + $0x30] sm:$0xff]
          %v2004 = vld [vmem:[#allocation2 + $0x38] sm:$0xff]
          %v2005 = vld [vmem:[#allocation2 + $0x40] sm:$0xff]
          %v2006 = vld [vmem:[#allocation2 + $0x48] sm:$0xff]
          %v2007 = vld [vmem:[#allocation2 + $0x50] sm:$0xff]
          %v2008 = vld [vmem:[#allocation2 + $0x58] sm:$0xff]
          %v2009 = vld [vmem:[#allocation2 + $0x60] sm:$0xff]
          %v2010 = vld [vmem:[#allocation2 + $0x68] sm:$0xff]
          %v2011 = vld [vmem:[#allocation2 + $0x70] sm:$0xff]
          %v2012 = vld [vmem:[#allocation2 + $0x78] sm:$0xff]
          %v2013 = vld [vmem:[#allocation2 + $0x80] sm:$0xff]
          %v2014 = vld [vmem:[#allocation2 + $0x88] sm:$0xff]
          %v2015 = vld [vmem:[#allocation2 + $0x90] sm:$0xff]
          %v2016 = vld [vmem:[#allocation2 + $0x98] sm:$0xff]
          %v2017 = vld [vmem:[#allocation2 + $0xa0] sm:$0xff]
          %v2018 = vld [vmem:[#allocation2 + $0xa8] sm:$0xff]
          %v2019 = vld [vmem:[#allocation2 + $0xb0] sm:$0xff]
          %v2020 = vld [vmem:[#allocation2 + $0xb8] sm:$0xff]
          %v2021 = vld [vmem:[#allocation2 + $0xc0] sm:$0xff]
          %v2022 = vld [vmem:[#allocation2 + $0xc8] sm:$0xff]
          %v2023 = vld [vmem:[#allocation2 + $0xd0] sm:$0xff]
          %v2024 = vld [vmem:[#allocation2 + $0xd8] sm:$0xff]
          %v2025 = vld [vmem:[#allocation2 + $0xe0] sm:$0xff]
          %v2026 = vld [vmem:[#allocation2 + $0xe8] sm:$0xff]
          %v2027 = vld [vmem:[#allocation2 + $0xf0] sm:$0xff]
          %v2028 = vld [vmem:[#allocation2 + $0xf8] sm:$0xff]
          %v2029 = vld [vmem:[%s10] sm:$0x3]
          %v2031 = vlaneseq
          %v2032 = vshrl.u32 %v2031, 7
          %v2033 = vsub.s32 0, %v2032
          %v2034 = vrot.slane %v2029, %v2033
          %v2035 = vlaneseq
          %v2036 = vshrl.u32 %v2035, 7
          %v2037 = vsub.s32 1, %v2036
          %v2038 = vrot.slane %v2029, %v2037
          %v2041 = vadd.f32 %v1997, %v2034
          %v2042 = vadd.f32 %v1998, %v2038
          %v2043 = vadd.f32 %v1999, %v2034
          %v2044 = vadd.f32 %v2000, %v2038
          %v2045 = vadd.f32 %v2001, %v2034
          %v2046 = vadd.f32 %v2002, %v2038
          %v2047 = vadd.f32 %v2003, %v2034
          %v2048 = vadd.f32 %v2004, %v2038
          %v2049 = vadd.f32 %v2005, %v2034
          %v2050 = vadd.f32 %v2006, %v2038
          %v2051 = vadd.f32 %v2007, %v2034
          %v2052 = vadd.f32 %v2008, %v2038
          %v2053 = vadd.f32 %v2009, %v2034
          %v2054 = vadd.f32 %v2010, %v2038
          %v2055 = vadd.f32 %v2011, %v2034
          %v2056 = vadd.f32 %v2012, %v2038
          %v2057 = vadd.f32 %v2013, %v2034
          %v2058 = vadd.f32 %v2014, %v2038
          %v2059 = vadd.f32 %v2015, %v2034
          %v2060 = vadd.f32 %v2016, %v2038
          %v2061 = vadd.f32 %v2017, %v2034
          %v2062 = vadd.f32 %v2018, %v2038
          %v2063 = vadd.f32 %v2019, %v2034
          %v2064 = vadd.f32 %v2020, %v2038
          %v2065 = vadd.f32 %v2021, %v2034
          %v2066 = vadd.f32 %v2022, %v2038
          %v2067 = vadd.f32 %v2023, %v2034
          %v2068 = vadd.f32 %v2024, %v2038
          %v2069 = vadd.f32 %v2025, %v2034
          %v2070 = vadd.f32 %v2026, %v2038
          %v2071 = vadd.f32 %v2027, %v2034
          %v2072 = vadd.f32 %v2028, %v2038
          %2073 = vst [vmem:[%s692] sm:$0xff] %v2041
          %2074 = vst [vmem:[%s692 + $0x8] sm:$0xff] %v2042
          %2075 = vst [vmem:[%s692 + $0x10] sm:$0xff] %v2043
          %2076 = vst [vmem:[%s692 + $0x18] sm:$0xff] %v2044
          %2077 = vst [vmem:[%s692 + $0x20] sm:$0xff] %v2045
          %2078 = vst [vmem:[%s692 + $0x28] sm:$0xff] %v2046
          %2079 = vst [vmem:[%s692 + $0x30] sm:$0xff] %v2047
          %2080 = vst [vmem:[%s692 + $0x38] sm:$0xff] %v2048
          %2081 = vst [vmem:[%s692 + $0x40] sm:$0xff] %v2049
          %2082 = vst [vmem:[%s692 + $0x48] sm:$0xff] %v2050
          %2083 = vst [vmem:[%s692 + $0x50] sm:$0xff] %v2051
          %2084 = vst [vmem:[%s692 + $0x58] sm:$0xff] %v2052
          %2085 = vst [vmem:[%s692 + $0x60] sm:$0xff] %v2053
          %2086 = vst [vmem:[%s692 + $0x68] sm:$0xff] %v2054
          %2087 = vst [vmem:[%s692 + $0x70] sm:$0xff] %v2055
          %2088 = vst [vmem:[%s692 + $0x78] sm:$0xff] %v2056
          %2089 = vst [vmem:[%s692 + $0x80] sm:$0xff] %v2057
          %2090 = vst [vmem:[%s692 + $0x88] sm:$0xff] %v2058
          %2091 = vst [vmem:[%s692 + $0x90] sm:$0xff] %v2059
          %2092 = vst [vmem:[%s692 + $0x98] sm:$0xff] %v2060
          %2093 = vst [vmem:[%s692 + $0xa0] sm:$0xff] %v2061
          %2094 = vst [vmem:[%s692 + $0xa8] sm:$0xff] %v2062
          %2095 = vst [vmem:[%s692 + $0xb0] sm:$0xff] %v2063
          %2096 = vst [vmem:[%s692 + $0xb8] sm:$0xff] %v2064
          %2097 = vst [vmem:[%s692 + $0xc0] sm:$0xff] %v2065
          %2098 = vst [vmem:[%s692 + $0xc8] sm:$0xff] %v2066
          %2099 = vst [vmem:[%s692 + $0xd0] sm:$0xff] %v2067
          %2100 = vst [vmem:[%s692 + $0xd8] sm:$0xff] %v2068
          %2101 = vst [vmem:[%s692 + $0xe0] sm:$0xff] %v2069
          %2102 = vst [vmem:[%s692 + $0xe8] sm:$0xff] %v2070
          %2103 = vst [vmem:[%s692 + $0xf0] sm:$0xff] %v2071
          %2104 = vst [vmem:[%s692 + $0xf8] sm:$0xff] %v2072
        $region100: #{multi_head_attention.1} parent=63 // pred_fallthru
          _
        %s2105 = sand.u32 %s349, 1
        %s2106 = scalar_lea.sflag [#allocation5], %s2105
        %s2107 = sand.u32 %s349, 1
        %s2108 = smul.addr %s2107, 256
        %s2109 = scalar_lea.vmem [#allocation15], %s2108
        // Predicated region
        $region101: #{multi_head_attention.1} parent=63 // pred_check
          %p2110 = pneg %p359
        $region102: #{multi_head_attention.1} parent=63 // pred_check_branch
          %2112 = sbr.rel (%p2110) target = $region104
        $region103: #{multi_head_attention.1} parent=63 // pred_region
          %s2113 = smul.u32 16, %s43
          %s2115 = ssub.s32 4096, 4096
          %2116 = vsyncadd %s2106, %s2115
          %s2117 = smul.addr %s2113, 2
          %s2118 = smul.addr %s42, 32
          %s2119 = sadd.s32 %s2117, %s2118
          %s2120 = smul.addr %s2119, 128
          %s2121 = scalar_lea.hbm %s11, %s2120
          %s2122 = sshll.u32 %s2109, 4
          %s2123 = int_to_ptr.vmem [resolvable:$true] %s2122
          %2128 = dma.vmem_to_hbm [thread:$0]  %s2123, 4096, %s2121, %s2106, 256, 256, 16
        $region104: #{multi_head_attention.1} parent=63 // pred_fallthru
          _
      $region64: #{multi_head_attention.1} parent=5 // pred_fallthru
        _
      %p2129 = scmp.le.s32.totalorder 2, %s32
      // Predicated region
      $region105: #{multi_head_attention.1} parent=5 // pred_check
        %p2130 = pneg %p2129
      $region106: #{multi_head_attention.1} parent=5 // pred_check_branch
        %2132 = sbr.rel (%p2130) target = $region108
      $region107: #{multi_head_attention.1} parent=5 // pred_region
        %s2133 = ssub.s32 %s32, 2
        // Predicated region
        $region109: #{multi_head_attention.1} parent=107 // pred_check
          %p2134 = pneg %p365
        $region110: #{multi_head_attention.1} parent=107 // pred_check_branch
          %2136 = sbr.rel (%p2134) target = $region112
        $region111: #{multi_head_attention.1} parent=107 // pred_region
          %s2137 = sand.u32 %s350, 1
          %s2138 = scalar_lea.sflag [#allocation5], %s2137
          %s2139 = sand.u32 %s350, 1
          %s2140 = smul.addr %s2139, 256
          %s2141 = scalar_lea.vmem [#allocation15], %s2140
          %2142 = dma.done %s2138, 4096
        $region112: #{multi_head_attention.1} parent=107 // pred_fallthru
          _
      $region108: #{multi_head_attention.1} parent=5 // pred_fallthru
        _
    $region6: #{multi_head_attention.1} parent=1 // loop_footer
      %s36 = sadd.s32 1, %s32
    $region7: #{multi_head_attention.1} parent=1 // loop_footer_branch
      %31 = sbr.rel target = $region3
    $region8: #{multi_head_attention.1} parent=1 // loop_exit
      _
    %2143 = vsyncpa [#allocation4], 1
    %s2144 = scalar_lea.sflag [#allocation4], 1
    %2145 = vsyncpa %s2144, 1
    %2146 = vsyncpa [#allocation7], 1
    %s2147 = scalar_lea.sflag [#allocation7], 1
    %2148 = vsyncpa %s2147, 1
    %2149 = vsyncpa [#allocation10], 1
    %s2150 = scalar_lea.sflag [#allocation10], 1
    %2151 = vsyncpa %s2150, 1
    %2152 = vsyncpa [#allocation13], 1
    %s2153 = scalar_lea.sflag [#allocation13], 1
    %2154 = vsyncpa %s2153, 1
    %2155 = vsyncpa [#allocation5], 1
    %s2156 = scalar_lea.sflag [#allocation5], 1
    %2157 = vsyncpa %s2156, 1

</llo_original>
